<compile_context>
chip_gen: v7x
topology: tpu7x:2x2x1
jax: 0.10.0
libtpu: 0.0.40
codegen_flags: <defaults>
</compile_context>

<pallas_src>
import functools

import jax
import jax.numpy as jnp
from jax.experimental import pallas as pl
from jax.experimental.pallas import tpu as pltpu


def _mha_kernel(xq_ref, xkv_ref, wq_ref, wkv_ref, wp_ref, bp_ref, o_ref,
                acc_ref, *, heads_per_group, head_size, approx_recip):
    # Grid: (batch, query_block, head_group).  Shapes seen by the kernel:
    #   xq_ref  : (1, Tq, E)  cdt      xkv_ref : (1, T, E)   cdt
    #   wq_ref  : (1, E, G*hs) cdt     wkv_ref : (1, E, 2*G*hs) cdt  [K | V]
    #   wp_ref  : (1, G*hs, E) cdt     bp_ref  : (1, E) f32
    #   o_ref   : (1, Tq, E)           acc_ref : (Tq, E) f32 scratch
    G, hs = heads_per_group, head_size
    g = pl.program_id(2)
    Tq = xq_ref.shape[1]
    T = xkv_ref.shape[1]
    cdt = wq_ref.dtype

    @pl.when(g == 0)
    def _init():
        acc_ref[...] = jnp.zeros_like(acc_ref)

    xq = xq_ref[0]          # (Tq, E)
    xkv = xkv_ref[0]        # (T, E)

    # Fused projections for the whole head group (contraction depth = E, one
    # wide MXU result instead of 3*G narrow ones).  1/sqrt(hs) is already
    # folded into Wq, and the matmul emits the compute dtype directly.
    q_all = jnp.dot(xq, wq_ref[0])        # (Tq, G*hs)
    kv_all = jnp.dot(xkv, wkv_ref[0])     # (T, 2*G*hs)  [k heads | v heads]

    # Causal mask for this query tile only (key index <= global query index).
    q0 = pl.program_id(1) * Tq
    qi = jax.lax.broadcasted_iota(jnp.int32, (Tq, T), 0) + q0
    ki = jax.lax.broadcasted_iota(jnp.int32, (Tq, T), 1)
    causal = ki <= qi

    ctx_parts = []
    for i in range(G):      # tiny static unroll; G*hs ~ 128
        q = q_all[:, i * hs:(i + 1) * hs]             # (Tq, hs)
        k = kv_all[:, i * hs:(i + 1) * hs]            # (T, hs)
        v = kv_all[:, (G + i) * hs:(G + i + 1) * hs]  # (T, hs)

        # scores in f32 (mask constant requires f32; MXU accumulates f32).
        s = jax.lax.dot_general(q, k, (((1,), (1,)), ((), ())),
                                preferred_element_type=jnp.float32)  # (Tq, T)
        s = jnp.where(causal, s, jnp.float32(-1e30))

        # Numerically stable softmax, normalization deferred past the PV dot.
        m = jnp.max(s, axis=-1, keepdims=True)
        p = jnp.exp(s - m)                                           # f32
        denom = jnp.sum(p, axis=-1, keepdims=True)                   # (Tq, 1)

        ctx = jnp.dot(p.astype(cdt), v,
                      preferred_element_type=jnp.float32)            # (Tq, hs)
        ctx = ctx * pl.reciprocal(denom, approx=approx_recip)        # EUP slot
        ctx_parts.append(ctx.astype(cdt))

    # One projection matmul per group with contraction depth G*hs instead of
    # G matmuls of depth hs:  concat_h(ctx_h) @ Wp[group rows].
    ctx_grp = jnp.concatenate(ctx_parts, axis=-1) if G > 1 else ctx_parts[0]
    acc_ref[...] += jnp.dot(ctx_grp, wp_ref[0],
                            preferred_element_type=jnp.float32)      # (Tq, E)

    @pl.when(g == pl.num_programs(2) - 1)
    def _finalize():
        o_ref[0] = (acc_ref[...] + bp_ref[...]).astype(o_ref.dtype)


def _pick_group_size(num_heads, head_size, target=128):
    """Smallest divisor G of num_heads with G*head_size >= min(target, E)."""
    full = num_heads * head_size
    for g in range(1, num_heads + 1):
        if num_heads % g == 0 and g * head_size >= min(target, full):
            return g
    return num_heads


def _pick_q_block(T, max_q_block):
    if T <= max_q_block:
        return T
    for cand in range(max_q_block, 7, -1):
        if T % cand == 0 and cand % 8 == 0:
            return cand
    return T


def _physical_vmem_bytes():
    try:
        info = pltpu.get_tpu_info()
        for attr in ("vmem_capacity_bytes", "vmem_size_bytes", "vmem_bytes"):
            v = getattr(info, attr, None)
            if v:
                return int(v)
    except Exception:
        pass
    return 64 * 1024 * 1024   # conservative: v7x per-TensorCore VMEM


def multi_head_attention(x, wq, wk, wv, wp, bp, *, num_heads,
                         compute_dtype=jnp.bfloat16, out_dtype=jnp.float32,
                         max_q_block=256):
    """x: (B, T, E) f32.  wq/wk/wv/wp: (E, E) in (in, out) layout (PyTorch
    Linear weights would be transposed).  Returns (B, T, E) in out_dtype."""
    B, T, E = x.shape
    assert E % num_heads == 0
    hs = E // num_heads
    cdt = jnp.dtype(compute_dtype)
    odt = jnp.dtype(out_dtype)

    G = _pick_group_size(num_heads, hs)     # heads per grid step
    nG = num_heads // G
    Tq = _pick_q_block(T, max_q_block)      # query rows per grid step
    nQ = T // Tq
    scale = 1.0 / (hs ** 0.5)

    # Group-major weight layouts; scale folded into Wq; K|V fused per group.
    wq_g = (wq * scale).reshape(E, nG, G * hs).transpose(1, 0, 2).astype(cdt)
    wk_g = wk.reshape(E, nG, G * hs).transpose(1, 0, 2)
    wv_g = wv.reshape(E, nG, G * hs).transpose(1, 0, 2)
    wkv_g = jnp.concatenate([wk_g, wv_g], axis=-1).astype(cdt)  # (nG, E, 2*G*hs)
    wp_g = wp.reshape(nG, G * hs, E).astype(cdt)                # (nG, G*hs, E)
    bp2 = bp.reshape(1, E).astype(jnp.float32)
    xc = x.astype(cdt)

    # VMEM footprint (double-buffered blocks + scratch + in-kernel temporaries)
    # -> generation-aware vmem_limit_bytes with headroom under physical VMEM.
    it, oit = cdt.itemsize, odt.itemsize
    per_step = (2 * Tq * E * it            # xq blocks
                + 2 * T * E * it           # xkv blocks
                + 2 * E * G * hs * it      # Wq group
                + 2 * E * 2 * G * hs * it  # W[k|v] group
                + 2 * G * hs * E * it      # Wproj group
                + 2 * E * 4                # bias
                + 2 * Tq * E * oit         # output blocks
                + Tq * E * 4               # f32 accumulator scratch
                + 3 * Tq * T * 4           # scores / exp temporaries
                + Tq * G * hs * 4 + T * 2 * G * hs * it)
    phys = _physical_vmem_bytes()
    vmem_limit = max(int(per_step * 1.5) + (8 << 20), 32 << 20)
    vmem_limit = max(min(vmem_limit, phys - (4 << 20)), 16 << 20)

    # Advisory cost estimate for XLA's scheduler.
    flops = int(B * (2 * T * E * E              # q projection
                     + 4 * T * E * E * nQ       # k/v projections (per q block)
                     + 4 * T * T * E            # scores + PV (summed over heads)
                     + 2 * T * E * E))          # output projection
    transcendentals = int(B * num_heads * T * T)
    bytes_accessed = int(2 * B * T * E * it + B * nQ * 4 * E * E * it
                         + B * T * E * oit + E * 4)

    kernel = functools.partial(
        _mha_kernel, heads_per_group=G, head_size=hs,
        approx_recip=(cdt != jnp.dtype(jnp.float32)))

    out = pl.pallas_call(
        kernel,
        out_shape=jax.ShapeDtypeStruct((B, T, E), odt),
        grid_spec=pltpu.PrefetchScalarGridSpec(
            num_scalar_prefetch=0,
            grid=(B, nQ, nG),                      # head groups innermost (reduction)
            in_specs=[
                pl.BlockSpec((1, Tq, E), lambda b, q, g: (b, q, 0)),          # x (query rows)
                pl.BlockSpec((1, T, E), lambda b, q, g: (b, 0, 0)),           # x (keys/values)
                pl.BlockSpec((1, E, G * hs), lambda b, q, g: (g, 0, 0)),      # Wq group
                pl.BlockSpec((1, E, 2 * G * hs), lambda b, q, g: (g, 0, 0)),  # W[k|v] group
                pl.BlockSpec((1, G * hs, E), lambda b, q, g: (g, 0, 0)),      # Wproj group
                pl.BlockSpec((1, E), lambda b, q, g: (0, 0)),                 # bproj
            ],
            # Full E kept in the last (lane) dim of the output block.
            out_specs=pl.BlockSpec((1, Tq, E), lambda b, q, g: (b, q, 0)),
            scratch_shapes=[pltpu.VMEM((Tq, E), jnp.float32)],
        ),
        compiler_params=pltpu.CompilerParams(
            dimension_semantics=("parallel", "parallel", "arbitrary"),
            vmem_limit_bytes=int(vmem_limit),
        ),
        cost_estimate=pl.CostEstimate(flops=flops,
                                      transcendentals=transcendentals,
                                      bytes_accessed=bytes_accessed),
    )(xc, xc, wq_g, wkv_g, wp_g, bp2)
    # Note: for very long T one would also tile K/V with online softmax
    # (full flash) instead of recomputing K/V per query block.
    return out


def _reference(x, wq, wk, wv, wp, bp, num_heads):
    B, T, E = x.shape
    hs = E // num_heads

    def split(z):  # (B, T, E) -> (B, nh, T, hs)
        return z.reshape(B, T, num_heads, hs).transpose(0, 2, 1, 3)

    q, k, v = split(x @ wq), split(x @ wk), split(x @ wv)
    s = jnp.einsum("bhqd,bhkd->bhqk", q, k) / (hs ** 0.5)
    mask = jnp.tril(jnp.ones((T, T), dtype=bool))
    s = jnp.where(mask, s, -jnp.inf)
    p = jax.nn.softmax(s, axis=-1)
    ctx = jnp.einsum("bhqk,bhkd->bhqd", p, v)
    ctx = ctx.transpose(0, 2, 1, 3).reshape(B, T, E)
    return ctx @ wp + bp


if __name__ == "__main__":
    # --- small config (matches the miniGPT toy dims) ---
    B, T, E, num_heads = 2, 8, 32, 4          # head_size = 8, block_size = T
    key = jax.random.PRNGKey(0)
    kx, kq, kk, kv, kp, kb = jax.random.split(key, 6)
    lim = 1.0 / (E ** 0.5)

    x = jax.random.normal(kx, (B, T, E), dtype=jnp.float32)
    wq = jax.random.uniform(kq, (E, E), jnp.float32, -lim, lim)
    wk = jax.random.uniform(kk, (E, E), jnp.float32, -lim, lim)
    wv = jax.random.uniform(kv, (E, E), jnp.float32, -lim, lim)
    wp = jax.random.uniform(kp, (E, E), jnp.float32, -lim, lim)
    bp = jax.random.uniform(kb, (E,), jnp.float32, -lim, lim)

    y_ref = _reference(x, wq, wk, wv, wp, bp, num_heads)

    # f32 compute path: tight numerics check of the kernel math.
    y32 = jax.block_until_ready(multi_head_attention(
        x, wq, wk, wv, wp, bp, num_heads=num_heads,
        compute_dtype=jnp.float32))
    assert y32.shape == (B, T, E)
    assert jnp.allclose(y32, y_ref, atol=1e-3, rtol=1e-3), "f32 kernel mismatch"

    # bf16 compute + bf16 output path (recommended for v6e/v7x), looser tol.
    ybf = jax.block_until_ready(multi_head_attention(
        x, wq, wk, wv, wp, bp, num_heads=num_heads,
        compute_dtype=jnp.bfloat16, out_dtype=jnp.bfloat16))
    assert ybf.shape == (B, T, E)
    assert jnp.allclose(ybf.astype(jnp.float32), y_ref,
                        atol=5e-2, rtol=5e-2), "bf16 kernel mismatch"

    # --- larger config: exercises real (8,128) tiling, multiple query blocks
    #     and multiple head groups (review correctness concern (d)) ---
    B2, T2, E2, nh2 = 1, 256, 256, 8          # hs=32 -> G=4, 2 groups; Tq=128 -> 2 q blocks
    k2 = jax.random.split(jax.random.PRNGKey(1), 6)
    lim2 = 1.0 / (E2 ** 0.5)
    x2 = jax.random.normal(k2[0], (B2, T2, E2), dtype=jnp.float32)
    wq2 = jax.random.uniform(k2[1], (E2, E2), jnp.float32, -lim2, lim2)
    wk2 = jax.random.uniform(k2[2], (E2, E2), jnp.float32, -lim2, lim2)
    wv2 = jax.random.uniform(k2[3], (E2, E2), jnp.float32, -lim2, lim2)
    wp2 = jax.random.uniform(k2[4], (E2, E2), jnp.float32, -lim2, lim2)
    bp2 = jax.random.uniform(k2[5], (E2,), jnp.float32, -lim2, lim2)

    y2_ref = _reference(x2, wq2, wk2, wv2, wp2, bp2, nh2)
    y2 = jax.block_until_ready(multi_head_attention(
        x2, wq2, wk2, wv2, wp2, bp2, num_heads=nh2,
        compute_dtype=jnp.float32, max_q_block=128))
    assert y2.shape == (B2, T2, E2)
    assert jnp.allclose(y2, y2_ref, atol=1e-2, rtol=1e-2), "tiled kernel mismatch"

    print("KERNEL_OK")
</pallas_src>

<mosaic_0001>
module attributes {stable_mosaic.version = 11 : i64} {
  func.func @_mha_kernel(%arg0: i32, %arg1: i32, %arg2: i32, %arg3: memref<1x8x32xf32, #tpu.memory_space<vmem>>, %arg4: memref<1x8x32xf32, #tpu.memory_space<vmem>>, %arg5: memref<1x32x32xf32, #tpu.memory_space<vmem>>, %arg6: memref<1x32x64xf32, #tpu.memory_space<vmem>>, %arg7: memref<1x32x32xf32, #tpu.memory_space<vmem>>, %arg8: memref<1x32xf32, #tpu.memory_space<vmem>>, %arg9: memref<1x8x32xf32, #tpu.memory_space<vmem>>, %arg10: memref<8x32xf32, #tpu.memory_space<vmem>>) attributes {dimension_semantics = [#tpu.dimension_semantics<parallel>, #tpu.dimension_semantics<parallel>, #tpu.dimension_semantics<arbitrary>], iteration_bounds = array<i64: 2, 1, 1>, scalar_prefetch = 0 : i64, scratch_operands = 1 : i64, tpu.core_type = #tpu.core_type<tc>, window_params = [{transform_indices = @transform_0, window_bounds = array<i64: 1, 8, 32>}, {transform_indices = @transform_1, window_bounds = array<i64: 1, 8, 32>}, {transform_indices = @transform_2, window_bounds = array<i64: 1, 32, 32>}, {transform_indices = @transform_3, window_bounds = array<i64: 1, 32, 64>}, {transform_indices = @transform_4, window_bounds = array<i64: 1, 32, 32>}, {pipeline_mode = #tpu.pipeline_mode<synchronous>, transform_indices = @transform_5, window_bounds = array<i64: 1, 32>}, {transform_indices = @transform_6, window_bounds = array<i64: 1, 8, 32>}]} {
    %c0_i32 = arith.constant 0 : i32
    %0 = arith.cmpi eq, %arg2, %c0_i32 : i32
    %1 = arith.extui %0 : i1 to i32
    %c0_i32_0 = arith.constant 0 : i32
    %2 = arith.cmpi ne, %1, %c0_i32_0 : i32
    scf.if %2 {
      %cst_43 = arith.constant 0.000000e+00 : f32
      %97 = vector.broadcast %cst_43 : f32 to vector<8x32xf32>
      %c0_44 = arith.constant 0 : index
      %c0_45 = arith.constant 0 : index
      %98 = vector.load %arg10[%c0_44, %c0_45] : memref<8x32xf32, #tpu.memory_space<vmem>>, vector<8x32xf32>
      tpu.vector_store %arg10[%c0_44, %c0_45], %97 {strides = array<i32>} : memref<8x32xf32, #tpu.memory_space<vmem>>, vector<8x32xf32>,
    } else {
    }
    %c0 = arith.constant 0 : index
    %c0_1 = arith.constant 0 : index
    %c0_2 = arith.constant 0 : index
    %3 = vector.load %arg3[%c0, %c0_1, %c0_2] : memref<1x8x32xf32, #tpu.memory_space<vmem>>, vector<1x8x32xf32>
    %4 = vector.shape_cast %3 : vector<1x8x32xf32> to vector<8x32xf32>
    %c0_3 = arith.constant 0 : index
    %c0_4 = arith.constant 0 : index
    %c0_5 = arith.constant 0 : index
    %5 = vector.load %arg4[%c0_3, %c0_4, %c0_5] : memref<1x8x32xf32, #tpu.memory_space<vmem>>, vector<1x8x32xf32>
    %6 = vector.shape_cast %5 : vector<1x8x32xf32> to vector<8x32xf32>
    %c0_6 = arith.constant 0 : index
    %c0_7 = arith.constant 0 : index
    %c0_8 = arith.constant 0 : index
    %7 = vector.load %arg5[%c0_6, %c0_7, %c0_8] : memref<1x32x32xf32, #tpu.memory_space<vmem>>, vector<1x32x32xf32>
    %8 = vector.shape_cast %7 : vector<1x32x32xf32> to vector<32x32xf32>
    %cst = arith.constant dense<0.000000e+00> : vector<8x32xf32>
    %9 = tpu.matmul %4, %8, %cst {dimension_numbers = #tpu.dot_dimension_numbers<[1], [0], [0], [1], [0, 0, 1, 1], [], []>} : vector<8x32xf32>, vector<32x32xf32>, vector<8x32xf32> -> vector<8x32xf32>
    %c0_9 = arith.constant 0 : index
    %c0_10 = arith.constant 0 : index
    %c0_11 = arith.constant 0 : index
    %10 = vector.load %arg6[%c0_9, %c0_10, %c0_11] : memref<1x32x64xf32, #tpu.memory_space<vmem>>, vector<1x32x64xf32>
    %11 = vector.shape_cast %10 : vector<1x32x64xf32> to vector<32x64xf32>
    %cst_12 = arith.constant dense<0.000000e+00> : vector<8x64xf32>
    %12 = tpu.matmul %6, %11, %cst_12 {dimension_numbers = #tpu.dot_dimension_numbers<[1], [0], [0], [1], [0, 0, 1, 1], [], []>} : vector<8x32xf32>, vector<32x64xf32>, vector<8x64xf32> -> vector<8x64xf32>
    %c8_i32 = arith.constant 8 : i32
    %13 = arith.muli %arg1, %c8_i32 : i32
    %14 = tpu.iota {dimensions = array<i32: 0>} : vector<8x8xi32>
    %15 = vector.broadcast %13 : i32 to vector<8x8xi32>
    %16 = arith.addi %14, %15 : vector<8x8xi32>
    %17 = tpu.iota {dimensions = array<i32: 1>} : vector<8x8xi32>
    %18 = arith.cmpi sle, %17, %16 : vector<8x8xi32>
    %19 = vector.extract_strided_slice %9 {offsets = [0, 0], sizes = [8, 8], strides = [1, 1]} : vector<8x32xf32> to vector<8x8xf32>
    %20 = vector.extract_strided_slice %12 {offsets = [0, 0], sizes = [8, 8], strides = [1, 1]} : vector<8x64xf32> to vector<8x8xf32>
    %21 = vector.extract_strided_slice %12 {offsets = [0, 32], sizes = [8, 8], strides = [1, 1]} : vector<8x64xf32> to vector<8x8xf32>
    %cst_13 = arith.constant dense<0.000000e+00> : vector<8x8xf32>
    %22 = tpu.matmul %19, %20, %cst_13 {dimension_numbers = #tpu.dot_dimension_numbers<[1], [1], [0], [0], [0, 0, 1, 0], [], []>} : vector<8x8xf32>, vector<8x8xf32>, vector<8x8xf32> -> vector<8x8xf32>
    %cst_14 = arith.constant -1.000000e+30 : f32
    %23 = vector.broadcast %cst_14 : f32 to vector<8x8xf32>
    %24 = arith.select %18, %22, %23 : vector<8x8xi1>, vector<8x8xf32>
    %cst_15 = arith.constant dense<0xFF800000> : vector<8xf32>
    %25 = vector.multi_reduction <maximumf>, %24, %cst_15 [1] : vector<8x8xf32> to vector<8xf32>
    %26 = vector.shape_cast %25 : vector<8xf32> to vector<8x1xf32>
    %27 = vector.broadcast %26 : vector<8x1xf32> to vector<8x8xf32>
    %28 = arith.subf %24, %27 : vector<8x8xf32>
    %29 = math.exp %28 : vector<8x8xf32>
    %cst_16 = arith.constant dense<0.000000e+00> : vector<8xf32>
    %30 = vector.multi_reduction <add>, %29, %cst_16 [1] : vector<8x8xf32> to vector<8xf32>
    %31 = vector.shape_cast %30 : vector<8xf32> to vector<8x1xf32>
    %cst_17 = arith.constant dense<0.000000e+00> : vector<8x8xf32>
    %32 = tpu.matmul %29, %21, %cst_17 {dimension_numbers = #tpu.dot_dimension_numbers<[1], [0], [0], [1], [0, 0, 1, 1], [], []>} : vector<8x8xf32>, vector<8x8xf32>, vector<8x8xf32> -> vector<8x8xf32>
    %33 = tpu.reciprocal %31 : vector<8x1xf32> -> vector<8x1xf32>
    %34 = vector.broadcast %33 : vector<8x1xf32> to vector<8x8xf32>
    %35 = arith.mulf %32, %34 : vector<8x8xf32>
    %36 = vector.extract_strided_slice %9 {offsets = [0, 8], sizes = [8, 8], strides = [1, 1]} : vector<8x32xf32> to vector<8x8xf32>
    %37 = vector.extract_strided_slice %12 {offsets = [0, 8], sizes = [8, 8], strides = [1, 1]} : vector<8x64xf32> to vector<8x8xf32>
    %38 = vector.extract_strided_slice %12 {offsets = [0, 40], sizes = [8, 8], strides = [1, 1]} : vector<8x64xf32> to vector<8x8xf32>
    %cst_18 = arith.constant dense<0.000000e+00> : vector<8x8xf32>
    %39 = tpu.matmul %36, %37, %cst_18 {dimension_numbers = #tpu.dot_dimension_numbers<[1], [1], [0], [0], [0, 0, 1, 0], [], []>} : vector<8x8xf32>, vector<8x8xf32>, vector<8x8xf32> -> vector<8x8xf32>
    %cst_19 = arith.constant -1.000000e+30 : f32
    %40 = vector.broadcast %cst_19 : f32 to vector<8x8xf32>
    %41 = arith.select %18, %39, %40 : vector<8x8xi1>, vector<8x8xf32>
    %cst_20 = arith.constant dense<0xFF800000> : vector<8xf32>
    %42 = vector.multi_reduction <maximumf>, %41, %cst_20 [1] : vector<8x8xf32> to vector<8xf32>
    %43 = vector.shape_cast %42 : vector<8xf32> to vector<8x1xf32>
    %44 = vector.broadcast %43 : vector<8x1xf32> to vector<8x8xf32>
    %45 = arith.subf %41, %44 : vector<8x8xf32>
    %46 = math.exp %45 : vector<8x8xf32>
    %cst_21 = arith.constant dense<0.000000e+00> : vector<8xf32>
    %47 = vector.multi_reduction <add>, %46, %cst_21 [1] : vector<8x8xf32> to vector<8xf32>
    %48 = vector.shape_cast %47 : vector<8xf32> to vector<8x1xf32>
    %cst_22 = arith.constant dense<0.000000e+00> : vector<8x8xf32>
    %49 = tpu.matmul %46, %38, %cst_22 {dimension_numbers = #tpu.dot_dimension_numbers<[1], [0], [0], [1], [0, 0, 1, 1], [], []>} : vector<8x8xf32>, vector<8x8xf32>, vector<8x8xf32> -> vector<8x8xf32>
    %50 = tpu.reciprocal %48 : vector<8x1xf32> -> vector<8x1xf32>
    %51 = vector.broadcast %50 : vector<8x1xf32> to vector<8x8xf32>
    %52 = arith.mulf %49, %51 : vector<8x8xf32>
    %53 = vector.extract_strided_slice %9 {offsets = [0, 16], sizes = [8, 8], strides = [1, 1]} : vector<8x32xf32> to vector<8x8xf32>
    %54 = vector.extract_strided_slice %12 {offsets = [0, 16], sizes = [8, 8], strides = [1, 1]} : vector<8x64xf32> to vector<8x8xf32>
    %55 = vector.extract_strided_slice %12 {offsets = [0, 48], sizes = [8, 8], strides = [1, 1]} : vector<8x64xf32> to vector<8x8xf32>
    %cst_23 = arith.constant dense<0.000000e+00> : vector<8x8xf32>
    %56 = tpu.matmul %53, %54, %cst_23 {dimension_numbers = #tpu.dot_dimension_numbers<[1], [1], [0], [0], [0, 0, 1, 0], [], []>} : vector<8x8xf32>, vector<8x8xf32>, vector<8x8xf32> -> vector<8x8xf32>
    %cst_24 = arith.constant -1.000000e+30 : f32
    %57 = vector.broadcast %cst_24 : f32 to vector<8x8xf32>
    %58 = arith.select %18, %56, %57 : vector<8x8xi1>, vector<8x8xf32>
    %cst_25 = arith.constant dense<0xFF800000> : vector<8xf32>
    %59 = vector.multi_reduction <maximumf>, %58, %cst_25 [1] : vector<8x8xf32> to vector<8xf32>
    %60 = vector.shape_cast %59 : vector<8xf32> to vector<8x1xf32>
    %61 = vector.broadcast %60 : vector<8x1xf32> to vector<8x8xf32>
    %62 = arith.subf %58, %61 : vector<8x8xf32>
    %63 = math.exp %62 : vector<8x8xf32>
    %cst_26 = arith.constant dense<0.000000e+00> : vector<8xf32>
    %64 = vector.multi_reduction <add>, %63, %cst_26 [1] : vector<8x8xf32> to vector<8xf32>
    %65 = vector.shape_cast %64 : vector<8xf32> to vector<8x1xf32>
    %cst_27 = arith.constant dense<0.000000e+00> : vector<8x8xf32>
    %66 = tpu.matmul %63, %55, %cst_27 {dimension_numbers = #tpu.dot_dimension_numbers<[1], [0], [0], [1], [0, 0, 1, 1], [], []>} : vector<8x8xf32>, vector<8x8xf32>, vector<8x8xf32> -> vector<8x8xf32>
    %67 = tpu.reciprocal %65 : vector<8x1xf32> -> vector<8x1xf32>
    %68 = vector.broadcast %67 : vector<8x1xf32> to vector<8x8xf32>
    %69 = arith.mulf %66, %68 : vector<8x8xf32>
    %70 = vector.extract_strided_slice %9 {offsets = [0, 24], sizes = [8, 8], strides = [1, 1]} : vector<8x32xf32> to vector<8x8xf32>
    %71 = vector.extract_strided_slice %12 {offsets = [0, 24], sizes = [8, 8], strides = [1, 1]} : vector<8x64xf32> to vector<8x8xf32>
    %72 = vector.extract_strided_slice %12 {offsets = [0, 56], sizes = [8, 8], strides = [1, 1]} : vector<8x64xf32> to vector<8x8xf32>
    %cst_28 = arith.constant dense<0.000000e+00> : vector<8x8xf32>
    %73 = tpu.matmul %70, %71, %cst_28 {dimension_numbers = #tpu.dot_dimension_numbers<[1], [1], [0], [0], [0, 0, 1, 0], [], []>} : vector<8x8xf32>, vector<8x8xf32>, vector<8x8xf32> -> vector<8x8xf32>
    %cst_29 = arith.constant -1.000000e+30 : f32
    %74 = vector.broadcast %cst_29 : f32 to vector<8x8xf32>
    %75 = arith.select %18, %73, %74 : vector<8x8xi1>, vector<8x8xf32>
    %cst_30 = arith.constant dense<0xFF800000> : vector<8xf32>
    %76 = vector.multi_reduction <maximumf>, %75, %cst_30 [1] : vector<8x8xf32> to vector<8xf32>
    %77 = vector.shape_cast %76 : vector<8xf32> to vector<8x1xf32>
    %78 = vector.broadcast %77 : vector<8x1xf32> to vector<8x8xf32>
    %79 = arith.subf %75, %78 : vector<8x8xf32>
    %80 = math.exp %79 : vector<8x8xf32>
    %cst_31 = arith.constant dense<0.000000e+00> : vector<8xf32>
    %81 = vector.multi_reduction <add>, %80, %cst_31 [1] : vector<8x8xf32> to vector<8xf32>
    %82 = vector.shape_cast %81 : vector<8xf32> to vector<8x1xf32>
    %cst_32 = arith.constant dense<0.000000e+00> : vector<8x8xf32>
    %83 = tpu.matmul %80, %72, %cst_32 {dimension_numbers = #tpu.dot_dimension_numbers<[1], [0], [0], [1], [0, 0, 1, 1], [], []>} : vector<8x8xf32>, vector<8x8xf32>, vector<8x8xf32> -> vector<8x8xf32>
    %84 = tpu.reciprocal %82 : vector<8x1xf32> -> vector<8x1xf32>
    %85 = vector.broadcast %84 : vector<8x1xf32> to vector<8x8xf32>
    %86 = arith.mulf %83, %85 : vector<8x8xf32>
    %87 = tpu.concatenate %35, %52, %69, %86 in 1 : vector<8x8xf32>, vector<8x8xf32>, vector<8x8xf32>, vector<8x8xf32> -> vector<8x32xf32>
    %c0_33 = arith.constant 0 : index
    %c0_34 = arith.constant 0 : index
    %88 = vector.load %arg10[%c0_33, %c0_34] : memref<8x32xf32, #tpu.memory_space<vmem>>, vector<8x32xf32>
    %c0_35 = arith.constant 0 : index
    %c0_36 = arith.constant 0 : index
    %c0_37 = arith.constant 0 : index
    %89 = vector.load %arg7[%c0_35, %c0_36, %c0_37] : memref<1x32x32xf32, #tpu.memory_space<vmem>>, vector<1x32x32xf32>
    %90 = vector.shape_cast %89 : vector<1x32x32xf32> to vector<32x32xf32>
    %cst_38 = arith.constant dense<0.000000e+00> : vector<8x32xf32>
    %91 = tpu.matmul %87, %90, %cst_38 {dimension_numbers = #tpu.dot_dimension_numbers<[1], [0], [0], [1], [0, 0, 1, 1], [], []>} : vector<8x32xf32>, vector<32x32xf32>, vector<8x32xf32> -> vector<8x32xf32>
    %92 = arith.addf %88, %91 : vector<8x32xf32>
    %c0_39 = arith.constant 0 : index
    %c0_40 = arith.constant 0 : index
    %93 = vector.load %arg10[%c0_39, %c0_40] : memref<8x32xf32, #tpu.memory_space<vmem>>, vector<8x32xf32>
    tpu.vector_store %arg10[%c0_39, %c0_40], %92 {strides = array<i32>} : memref<8x32xf32, #tpu.memory_space<vmem>>, vector<8x32xf32>,
    %c0_i32_41 = arith.constant 0 : i32
    %94 = arith.cmpi eq, %arg2, %c0_i32_41 : i32
    %95 = arith.extui %94 : i1 to i32
    %c0_i32_42 = arith.constant 0 : i32
    %96 = arith.cmpi ne, %95, %c0_i32_42 : i32
    scf.if %96 {
      %c0_43 = arith.constant 0 : index
      %c0_44 = arith.constant 0 : index
      %97 = vector.load %arg10[%c0_43, %c0_44] : memref<8x32xf32, #tpu.memory_space<vmem>>, vector<8x32xf32>
      %c0_45 = arith.constant 0 : index
      %c0_46 = arith.constant 0 : index
      %98 = vector.load %arg8[%c0_45, %c0_46] : memref<1x32xf32, #tpu.memory_space<vmem>>, vector<1x32xf32>
      %99 = vector.broadcast %98 : vector<1x32xf32> to vector<8x32xf32>
      %100 = arith.addf %97, %99 : vector<8x32xf32>
      %c0_47 = arith.constant 0 : index
      %c0_48 = arith.constant 0 : index
      %c0_49 = arith.constant 0 : index
      %101 = vector.load %arg9[%c0_47, %c0_48, %c0_49] : memref<1x8x32xf32, #tpu.memory_space<vmem>>, vector<1x8x32xf32>
      %102 = vector.shape_cast %101 : vector<1x8x32xf32> to vector<8x32xf32>
      %103 = vector.shape_cast %100 : vector<8x32xf32> to vector<1x8x32xf32>
      tpu.vector_store %arg9[%c0_47, %c0_48, %c0_49], %103 {strides = array<i32>} : memref<1x8x32xf32, #tpu.memory_space<vmem>>, vector<1x8x32xf32>,
    } else {
    }
    return
  }
  func.func @transform_0(%arg0: i32, %arg1: i32, %arg2: i32) -> (i32, i32, i32) {
    %c0_i32 = arith.constant 0 : i32
    %c0_i32_0 = arith.constant 0 : i32
    return %arg0, %arg1, %c0_i32 : i32, i32, i32
  }
  func.func @transform_1(%arg0: i32, %arg1: i32, %arg2: i32) -> (i32, i32, i32) {
    %c0_i32 = arith.constant 0 : i32
    %c0_i32_0 = arith.constant 0 : i32
    %c0_i32_1 = arith.constant 0 : i32
    return %arg0, %c0_i32, %c0_i32_0 : i32, i32, i32
  }
  func.func @transform_2(%arg0: i32, %arg1: i32, %arg2: i32) -> (i32, i32, i32) {
    %c0_i32 = arith.constant 0 : i32
    %c0_i32_0 = arith.constant 0 : i32
    %c0_i32_1 = arith.constant 0 : i32
    return %arg2, %c0_i32, %c0_i32_0 : i32, i32, i32
  }
  func.func @transform_3(%arg0: i32, %arg1: i32, %arg2: i32) -> (i32, i32, i32) {
    %c0_i32 = arith.constant 0 : i32
    %c0_i32_0 = arith.constant 0 : i32
    %c0_i32_1 = arith.constant 0 : i32
    return %arg2, %c0_i32, %c0_i32_0 : i32, i32, i32
  }
  func.func @transform_4(%arg0: i32, %arg1: i32, %arg2: i32) -> (i32, i32, i32) {
    %c0_i32 = arith.constant 0 : i32
    %c0_i32_0 = arith.constant 0 : i32
    %c0_i32_1 = arith.constant 0 : i32
    return %arg2, %c0_i32, %c0_i32_0 : i32, i32, i32
  }
  func.func @transform_5(%arg0: i32, %arg1: i32, %arg2: i32) -> (i32, i32) {
    %c0_i32 = arith.constant 0 : i32
    %c0_i32_0 = arith.constant 0 : i32
    %c0_i32_1 = arith.constant 0 : i32
    return %c0_i32, %c0_i32_0 : i32, i32
  }
  func.func @transform_6(%arg0: i32, %arg1: i32, %arg2: i32) -> (i32, i32, i32) {
    %c0_i32 = arith.constant 0 : i32
    %c0_i32_0 = arith.constant 0 : i32
    return %arg0, %arg1, %c0_i32 : i32, i32, i32
  }
}

</mosaic_0001>

<llo_original>
// kernel: tpu_custom_call.1
$region0: #{tpu_custom_call.1}
  #allocation0 [shape = 'u32[]', space=smem, size = 0x4, offset = 0x4, fixed_abs, tag = 'smem constant byte address 0x4 - core index']
  #allocation1 [shape = 'u32[144,128]{1,0:T(1,128)}', space=vmem, size = 0x12000, scoped, tag = 'internal scratch']
  #allocation2 [shape = 'f32[8,32]{1,0:T(8,128)}', space=vmem, size = 0x1000, scoped, tag = 'scratch operand']
  %s0 = inlined_call_operand.hbm [shape: f32[2,8,32], index: 0, kind: input, shape index: {}]
  %s1 = inlined_call_operand.hbm [shape: f32[2,8,32], index: 1, kind: input, shape index: {}]
  %s2 = inlined_call_operand.hbm [shape: f32[1,32,32], index: 2, kind: input, shape index: {}]
  %s3 = inlined_call_operand.hbm [shape: f32[1,32,64], index: 3, kind: input, shape index: {}]
  %s4 = inlined_call_operand.hbm [shape: f32[1,32,32], index: 4, kind: input, shape index: {}]
  %s5 = inlined_call_operand.vmem [shape: f32[1,32], index: 5, kind: input, shape index: {}]
  %s6 = inlined_call_operand.hbm [shape: f32[2,8,32], index: 6, kind: output, shape index: {}]
  %s7 = sld [smem:[#allocation0]]
  $region85: #{tpu_custom_call.1} parent=0
    _
  %s9 = ssub.s32 1, %s7
  %s10 = scalar_select 0, %s9, %s7
  $region1: #{tpu_custom_call.1} parent=0
    #allocation3 [shape = 'u8[8192]{0}', space=vmem, size = 0x2000, scoped, tag = 'input window, operand 0']
    #allocation4 [shape = 's32[2]{0}', space=sflag, size = 0x8, scoped, tag = 'scoped memory for tpu_custom_call.1']
    #allocation5 [shape = 's32[2]{0}', space=sflag, size = 0x8, scoped, tag = 'scoped memory for tpu_custom_call.1']
    #allocation6 [shape = 'u8[8192]{0}', space=vmem, size = 0x2000, scoped, tag = 'input window, operand 1']
    #allocation7 [shape = 's32[2]{0}', space=sflag, size = 0x8, scoped, tag = 'scoped memory for tpu_custom_call.1']
    #allocation8 [shape = 'u8[16384]{0}', space=vmem, size = 0x4000, scoped, tag = 'input window, operand 2, single buffered']
    #allocation9 [shape = 'u8[16384]{0}', space=vmem, size = 0x4000, scoped, tag = 'input window, operand 3, single buffered']
    #allocation10 [shape = 's32[1]{0}', space=sflag, size = 0x4, scoped, tag = 'scoped memory for tpu_custom_call.1']
    #allocation11 [shape = 'u8[16384]{0}', space=vmem, size = 0x4000, scoped, tag = 'input window, operand 4, single buffered']
    #allocation12 [shape = 'u8[8192]{0}', space=vmem, size = 0x2000, scoped, tag = 'output window, operand 0']
    %11 = vsyncpa [#allocation4], 0
    %s12 = scalar_lea.sflag [#allocation4], 1
    %13 = vsyncpa %s12, 0
    %14 = vsyncpa [#allocation7], 0
    %s15 = scalar_lea.sflag [#allocation7], 1
    %16 = vsyncpa %s15, 0
    %17 = vsyncpa [#allocation10], 0
    %18 = vsyncpa [#allocation5], 0
    %s19 = scalar_lea.sflag [#allocation5], 1
    %20 = vsyncpa %s19, 0
    loop: start=0, step=1, limit=4
    $region2: #{tpu_custom_call.1} parent=1 // loop_pre_header
      _
    $region3: #{tpu_custom_call.1} parent=1 // loop_header
      %s22 = sphi 0, %s26
      %p23 = scmp.ge.s32.totalorder %s22, 4
      %s29 = sphi 0, %s48
      %s30 = sphi 0, %s44
      %s31 = sphi 0, %s40
      %s32 = sphi 0, %s29
      %s33 = sphi 0, %s30
      %s34 = sphi 0, %s31
      %s35 = sphi 0, %s32
      %s36 = sphi 0, %s33
      %s37 = sphi 0, %s34
      %s53 = sphi 0, %s55
      %s56 = sphi 0, %s53
      %s57 = sphi 0, %s56
      %s73 = sphi 0, %s57
      %s79 = sphi 0, %s81
      %s82 = sphi 0, %s79
      %s83 = sphi 0, %s82
      %s99 = sphi 0, %s83
      %s105 = sphi 0, %s107
      %s108 = sphi 0, %s105
      %s109 = sphi 0, %s108
      %s125 = sphi 0, %s109
      %s131 = sphi 0, %s133
      %s134 = sphi 0, %s131
      %s135 = sphi 0, %s134
      %s151 = sphi 0, %s135
      %s157 = sphi 0, %s159
      %s160 = sphi 0, %s157
      %s161 = sphi 0, %s160
      %s177 = sphi 0, %s161
      %s181 = sphi 0, %s181
      %s183 = sphi 0, %s181
      %s184 = sphi 0, %s183
      %s198 = sphi 0, %s184
      %s206 = sphi 0, %s208
      %s209 = sphi 0, %s206
      %s210 = sphi 0, %s209
      %s226 = sphi 0, %s210
    $region4: #{tpu_custom_call.1} parent=1 // loop_header_branch
      %25 = sbr.rel (%p23) target = $region8
    $region5: #{tpu_custom_call.1} parent=1 // loop_body
      %s27 = ssub.s32 %s22, 1
      %s28 = ssub.s32 %s22, 2
      %s38 = sadd.s32 1, %s31
      %p39 = scmp.ge.s32.totalorder %s38, 1
      %s40 = scalar_select %p39, 0, %s38
      %s41 = sadd.s32 1, %s30
      %s42 = scalar_select %p39, %s41, %s30
      %p43 = scmp.ge.s32.totalorder %s42, 1
      %s44 = scalar_select %p43, 0, %s42
      %s45 = sadd.s32 1, %s29
      %s46 = scalar_select %p43, %s45, %s29
      %p47 = scmp.ge.s32.totalorder %s46, 2
      %s48 = scalar_select %p47, 0, %s46
      %s49 = ssub.s32 %s29, %s48
      %s50 = ssub.s32 %s30, %s44
      %s51 = sor.u32 %s49, %s50
      %p52 = scmp.eq.s32.totalorder %s51, 0
      %s54 = sadd.s32 %s53, 1
      %s55 = scalar_select %p52, %s53, %s54
      %p58 = pneg %p52
      %p59 = scmp.eq.s32.totalorder %s22, 1
      %p60 = por %p58, %p59
      %p61 = scmp.ne.s32.totalorder %s53, %s56
      %p62 = scmp.eq.s32.totalorder %s22, 0
      %p63 = por %p61, %p62
      %p64 = scmp.ne.s32.totalorder %s53, %s56
      %p65 = scmp.eq.s32.totalorder %s27, 1
      %p66 = por %p64, %p65
      %p67 = scmp.ne.s32.totalorder %s56, %s57
      %p68 = scmp.eq.s32.totalorder %s27, 0
      %p69 = por %p67, %p68
      %p70 = scmp.ne.s32.totalorder %s56, %s57
      %p71 = scmp.eq.s32.totalorder %s28, 1
      %p72 = por %p70, %p71
      %p74 = scmp.ne.s32.totalorder %s57, %s73
      %p75 = scmp.eq.s32.totalorder %s28, 0
      %p76 = por %p74, %p75
      %s77 = ssub.s32 %s29, %s48
      %p78 = scmp.eq.s32.totalorder %s77, 0
      %s80 = sadd.s32 %s79, 1
      %s81 = scalar_select %p78, %s79, %s80
      %p84 = pneg %p78
      %p85 = scmp.eq.s32.totalorder %s22, 1
      %p86 = por %p84, %p85
      %p87 = scmp.ne.s32.totalorder %s79, %s82
      %p88 = scmp.eq.s32.totalorder %s22, 0
      %p89 = por %p87, %p88
      %p90 = scmp.ne.s32.totalorder %s79, %s82
      %p91 = scmp.eq.s32.totalorder %s27, 1
      %p92 = por %p90, %p91
      %p93 = scmp.ne.s32.totalorder %s82, %s83
      %p94 = scmp.eq.s32.totalorder %s27, 0
      %p95 = por %p93, %p94
      %p96 = scmp.ne.s32.totalorder %s82, %s83
      %p97 = scmp.eq.s32.totalorder %s28, 1
      %p98 = por %p96, %p97
      %p100 = scmp.ne.s32.totalorder %s83, %s99
      %p101 = scmp.eq.s32.totalorder %s28, 0
      %p102 = por %p100, %p101
      %s103 = ssub.s32 %s31, %s40
      %p104 = scmp.eq.s32.totalorder %s103, 0
      %s106 = sadd.s32 %s105, 1
      %s107 = scalar_select %p104, %s105, %s106
      %p110 = pneg %p104
      %p111 = scmp.eq.s32.totalorder %s22, 1
      %p112 = por %p110, %p111
      %p113 = scmp.ne.s32.totalorder %s105, %s108
      %p114 = scmp.eq.s32.totalorder %s22, 0
      %p115 = por %p113, %p114
      %p116 = scmp.ne.s32.totalorder %s105, %s108
      %p117 = scmp.eq.s32.totalorder %s27, 1
      %p118 = por %p116, %p117
      %p119 = scmp.ne.s32.totalorder %s108, %s109
      %p120 = scmp.eq.s32.totalorder %s27, 0
      %p121 = por %p119, %p120
      %p122 = scmp.ne.s32.totalorder %s108, %s109
      %p123 = scmp.eq.s32.totalorder %s28, 1
      %p124 = por %p122, %p123
      %p126 = scmp.ne.s32.totalorder %s109, %s125
      %p127 = scmp.eq.s32.totalorder %s28, 0
      %p128 = por %p126, %p127
      %s129 = ssub.s32 %s31, %s40
      %p130 = scmp.eq.s32.totalorder %s129, 0
      %s132 = sadd.s32 %s131, 1
      %s133 = scalar_select %p130, %s131, %s132
      %p136 = pneg %p130
      %p137 = scmp.eq.s32.totalorder %s22, 1
      %p138 = por %p136, %p137
      %p139 = scmp.ne.s32.totalorder %s131, %s134
      %p140 = scmp.eq.s32.totalorder %s22, 0
      %p141 = por %p139, %p140
      %p142 = scmp.ne.s32.totalorder %s131, %s134
      %p143 = scmp.eq.s32.totalorder %s27, 1
      %p144 = por %p142, %p143
      %p145 = scmp.ne.s32.totalorder %s134, %s135
      %p146 = scmp.eq.s32.totalorder %s27, 0
      %p147 = por %p145, %p146
      %p148 = scmp.ne.s32.totalorder %s134, %s135
      %p149 = scmp.eq.s32.totalorder %s28, 1
      %p150 = por %p148, %p149
      %p152 = scmp.ne.s32.totalorder %s135, %s151
      %p153 = scmp.eq.s32.totalorder %s28, 0
      %p154 = por %p152, %p153
      %s155 = ssub.s32 %s31, %s40
      %p156 = scmp.eq.s32.totalorder %s155, 0
      %s158 = sadd.s32 %s157, 1
      %s159 = scalar_select %p156, %s157, %s158
      %p162 = pneg %p156
      %p163 = scmp.eq.s32.totalorder %s22, 1
      %p164 = por %p162, %p163
      %p165 = scmp.ne.s32.totalorder %s157, %s160
      %p166 = scmp.eq.s32.totalorder %s22, 0
      %p167 = por %p165, %p166
      %p168 = scmp.ne.s32.totalorder %s157, %s160
      %p169 = scmp.eq.s32.totalorder %s27, 1
      %p170 = por %p168, %p169
      %p171 = scmp.ne.s32.totalorder %s160, %s161
      %p172 = scmp.eq.s32.totalorder %s27, 0
      %p173 = por %p171, %p172
      %p174 = scmp.ne.s32.totalorder %s160, %s161
      %p175 = scmp.eq.s32.totalorder %s28, 1
      %p176 = por %p174, %p175
      %p178 = scmp.ne.s32.totalorder %s161, %s177
      %p179 = scmp.eq.s32.totalorder %s28, 0
      %p180 = por %p178, %p179
      %s182 = sadd.s32 %s181, 1
      %p185 = scmp.eq.s32.totalorder %s22, 1
      %p186 = scmp.ne.s32.totalorder %s181, %s183
      %p187 = scmp.eq.s32.totalorder %s22, 0
      %p188 = por %p186, %p187
      %p189 = scmp.ne.s32.totalorder %s181, %s183
      %p190 = scmp.eq.s32.totalorder %s27, 1
      %p191 = por %p189, %p190
      %p192 = scmp.ne.s32.totalorder %s183, %s184
      %p193 = scmp.eq.s32.totalorder %s27, 0
      %p194 = por %p192, %p193
      %p195 = scmp.ne.s32.totalorder %s183, %s184
      %p196 = scmp.eq.s32.totalorder %s28, 1
      %p197 = por %p195, %p196
      %p199 = scmp.ne.s32.totalorder %s184, %s198
      %p200 = scmp.eq.s32.totalorder %s28, 0
      %p201 = por %p199, %p200
      %s202 = ssub.s32 %s29, %s48
      %s203 = ssub.s32 %s30, %s44
      %s204 = sor.u32 %s202, %s203
      %p205 = scmp.eq.s32.totalorder %s204, 0
      %s207 = sadd.s32 %s206, 1
      %s208 = scalar_select %p205, %s206, %s207
      %p211 = pneg %p205
      %p212 = scmp.eq.s32.totalorder %s22, 1
      %p213 = por %p211, %p212
      %p214 = scmp.ne.s32.totalorder %s206, %s209
      %p215 = scmp.eq.s32.totalorder %s22, 0
      %p216 = por %p214, %p215
      %p217 = scmp.ne.s32.totalorder %s206, %s209
      %p218 = scmp.eq.s32.totalorder %s27, 1
      %p219 = por %p217, %p218
      %p220 = scmp.ne.s32.totalorder %s209, %s210
      %p221 = scmp.eq.s32.totalorder %s27, 0
      %p222 = por %p220, %p221
      %p223 = scmp.ne.s32.totalorder %s209, %s210
      %p224 = scmp.eq.s32.totalorder %s28, 1
      %p225 = por %p223, %p224
      %p227 = scmp.ne.s32.totalorder %s210, %s226
      %p228 = scmp.eq.s32.totalorder %s28, 0
      %p229 = por %p227, %p228
      %p230 = scmp.le.s32.totalorder 1, %s22
      %p231 = scmp.lt.s32.totalorder %s22, 3
      %p232 = pnand %p230, %p231
      %p233 = pneg %p232
      // Predicated region
      $region9: #{tpu_custom_call.1} parent=5 // pred_check
        _
      $region10: #{tpu_custom_call.1} parent=5 // pred_check_branch
        %235 = sbr.rel (%p232) target = $region12
      $region11: #{tpu_custom_call.1} parent=5 // pred_region
        %s236 = ssub.s32 %s22, 1
        // Predicated region
        $region13: #{tpu_custom_call.1} parent=11 // pred_check
          %p237 = pneg %p121
        $region14: #{tpu_custom_call.1} parent=11 // pred_check_branch
          %239 = sbr.rel (%p237) target = $region16
        $region15: #{tpu_custom_call.1} parent=11 // pred_region
          %s241 = ssub.s32 512, 512
          %242 = vsyncadd [#allocation7], %s241
          %s243 = smul.addr %s34, 4
          %s244 = smul.addr %s243, 128
          %s245 = scalar_lea.hbm %s2, %s244
          %s246 = sshll.u32 [#allocation8], 4
          %s247 = int_to_ptr.vmem [resolvable:$true] %s246
          %252 = dma.hbm_to_vmem [thread:$0]  %s245, 512, %s247, [#allocation7], 128, 128, 8
        $region16: #{tpu_custom_call.1} parent=11 // pred_fallthru
          _
        // Predicated region
        $region17: #{tpu_custom_call.1} parent=11 // pred_check
          %p253 = pneg %p147
        $region18: #{tpu_custom_call.1} parent=11 // pred_check_branch
          %255 = sbr.rel (%p253) target = $region20
        $region19: #{tpu_custom_call.1} parent=11 // pred_region
          %s257 = ssub.s32 512, 512
          %258 = vsyncadd [#allocation10], %s257
          %s259 = smul.addr %s34, 4
          %s260 = smul.addr %s259, 128
          %s261 = scalar_lea.hbm %s3, %s260
          %s262 = sshll.u32 [#allocation9], 4
          %s263 = int_to_ptr.vmem [resolvable:$true] %s262
          %268 = dma.hbm_to_vmem [thread:$0]  %s261, 512, %s263, [#allocation10], 128, 128, 8
        $region20: #{tpu_custom_call.1} parent=11 // pred_fallthru
          _
        // Predicated region
        $region21: #{tpu_custom_call.1} parent=11 // pred_check
          %p269 = pneg %p173
        $region22: #{tpu_custom_call.1} parent=11 // pred_check_branch
          %271 = sbr.rel (%p269) target = $region24
        $region23: #{tpu_custom_call.1} parent=11 // pred_region
          %s273 = ssub.s32 512, 512
          %274 = vsyncadd [#allocation10], %s273
          %s275 = smul.addr %s34, 4
          %s276 = smul.addr %s275, 128
          %s277 = scalar_lea.hbm %s4, %s276
          %s278 = sshll.u32 [#allocation11], 4
          %s279 = int_to_ptr.vmem [resolvable:$true] %s278
          %284 = dma.hbm_to_vmem [thread:$0]  %s277, 512, %s279, [#allocation10], 128, 128, 8
        $region24: #{tpu_custom_call.1} parent=11 // pred_fallthru
          _
        // Predicated region
        $region25: #{tpu_custom_call.1} parent=11 // pred_check
          %p285 = pneg %p194
        $region26: #{tpu_custom_call.1} parent=11 // pred_check_branch
          %287 = sbr.rel (%p285) target = $region28
        $region27: #{tpu_custom_call.1} parent=11 // pred_region
          _
        $region28: #{tpu_custom_call.1} parent=11 // pred_fallthru
          _
      $region12: #{tpu_custom_call.1} parent=5 // pred_fallthru
        _
      %p288 = scmp.lt.s32.totalorder %s22, 2
      // Predicated region
      $region29: #{tpu_custom_call.1} parent=5 // pred_check
        %p289 = pneg %p288
      $region30: #{tpu_custom_call.1} parent=5 // pred_check_branch
        %291 = sbr.rel (%p289) target = $region32
      $region31: #{tpu_custom_call.1} parent=5 // pred_region
        // Predicated region
        $region33: #{tpu_custom_call.1} parent=31 // pred_check
          %p292 = pneg %p63
        $region34: #{tpu_custom_call.1} parent=31 // pred_check_branch
          %294 = sbr.rel (%p292) target = $region36
        $region35: #{tpu_custom_call.1} parent=31 // pred_region
          %s295 = sand.u32 %s53, 1
          %s296 = scalar_lea.sflag [#allocation4], %s295
          %s297 = sand.u32 %s53, 1
          %s298 = smul.addr %s297, 8
          %s299 = scalar_lea.vmem [#allocation3], %s298
          %s301 = ssub.s32 128, 128
          %302 = vsyncadd %s296, %s301
          %s303 = sadd.s32 %s30, %s29
          %s304 = smul.addr %s303, 128
          %s305 = scalar_lea.hbm %s0, %s304
          %s307 = sshll.u32 %s299, 4
          %s308 = int_to_ptr.vmem [resolvable:$true] %s307
          %310 = dma.hbm_to_vmem [thread:$0]  %s305, 128, %s308, %s296
        $region36: #{tpu_custom_call.1} parent=31 // pred_fallthru
          _
        // Predicated region
        $region37: #{tpu_custom_call.1} parent=31 // pred_check
          %p311 = pneg %p89
        $region38: #{tpu_custom_call.1} parent=31 // pred_check_branch
          %313 = sbr.rel (%p311) target = $region40
        $region39: #{tpu_custom_call.1} parent=31 // pred_region
          %s314 = sand.u32 %s22, 1
          %s315 = scalar_lea.sflag [#allocation7], %s314
          %s316 = sand.u32 %s79, 1
          %s317 = smul.addr %s316, 8
          %s318 = scalar_lea.vmem [#allocation6], %s317
          %s320 = ssub.s32 128, 128
          %321 = vsyncadd %s315, %s320
          %s322 = smul.addr %s29, 128
          %s323 = scalar_lea.hbm %s1, %s322
          %s325 = sshll.u32 %s318, 4
          %s326 = int_to_ptr.vmem [resolvable:$true] %s325
          %328 = dma.hbm_to_vmem [thread:$0]  %s323, 128, %s326, %s315
        $region40: #{tpu_custom_call.1} parent=31 // pred_fallthru
          _
      $region32: #{tpu_custom_call.1} parent=5 // pred_fallthru
        _
      %p329 = scmp.le.s32.totalorder 1, %s22
      %p330 = scmp.lt.s32.totalorder %s22, 3
      %p331 = pnand %p329, %p330
      %p332 = pneg %p331
      // Predicated region
      $region41: #{tpu_custom_call.1} parent=5 // pred_check
        _
      $region42: #{tpu_custom_call.1} parent=5 // pred_check_branch
        %334 = sbr.rel (%p331) target = $region44
      $region43: #{tpu_custom_call.1} parent=5 // pred_region
        %s335 = ssub.s32 %s22, 1
        %s336 = sand.u32 %s56, 1
        %s337 = scalar_lea.sflag [#allocation4], %s336
        %s338 = sand.u32 %s56, 1
        %s339 = smul.addr %s338, 8
        %s340 = scalar_lea.vmem [#allocation3], %s339
        // Predicated region
        $region45: #{tpu_custom_call.1} parent=43 // pred_check
          %p341 = pneg %p69
        $region46: #{tpu_custom_call.1} parent=43 // pred_check_branch
          %343 = sbr.rel (%p341) target = $region48
        $region47: #{tpu_custom_call.1} parent=43 // pred_region
          %344 = dma.done %s337, 128
        $region48: #{tpu_custom_call.1} parent=43 // pred_fallthru
          _
        %s345 = sand.u32 %s27, 1
        %s346 = scalar_lea.sflag [#allocation7], %s345
        %s347 = sand.u32 %s82, 1
        %s348 = smul.addr %s347, 8
        %s349 = scalar_lea.vmem [#allocation6], %s348
        // Predicated region
        $region49: #{tpu_custom_call.1} parent=43 // pred_check
          %p350 = pneg %p95
        $region50: #{tpu_custom_call.1} parent=43 // pred_check_branch
          %352 = sbr.rel (%p350) target = $region52
        $region51: #{tpu_custom_call.1} parent=43 // pred_region
          %353 = dma.done %s346, 128
        $region52: #{tpu_custom_call.1} parent=43 // pred_fallthru
          _
        // Predicated region
        $region53: #{tpu_custom_call.1} parent=43 // pred_check
          %p354 = pneg %p121
        $region54: #{tpu_custom_call.1} parent=43 // pred_check_branch
          %356 = sbr.rel (%p354) target = $region56
        $region55: #{tpu_custom_call.1} parent=43 // pred_region
          %357 = dma.done [#allocation7], 512
        $region56: #{tpu_custom_call.1} parent=43 // pred_fallthru
          _
        // Predicated region
        $region57: #{tpu_custom_call.1} parent=43 // pred_check
          %p358 = pneg %p147
        $region58: #{tpu_custom_call.1} parent=43 // pred_check_branch
          %360 = sbr.rel (%p358) target = $region60
        $region59: #{tpu_custom_call.1} parent=43 // pred_region
          %361 = dma.done [#allocation10], 512
        $region60: #{tpu_custom_call.1} parent=43 // pred_fallthru
          _
        // Predicated region
        $region61: #{tpu_custom_call.1} parent=43 // pred_check
          %p362 = pneg %p173
        $region62: #{tpu_custom_call.1} parent=43 // pred_check_branch
          %364 = sbr.rel (%p362) target = $region64
        $region63: #{tpu_custom_call.1} parent=43 // pred_region
          %365 = dma.done [#allocation10], 512
        $region64: #{tpu_custom_call.1} parent=43 // pred_fallthru
          _
        %s366 = sand.u32 %s56, 1
        %s367 = scalar_lea.sflag [#allocation4], %s366
        %s368 = sand.u32 %s56, 1
        %s369 = smul.addr %s368, 8
        %s370 = scalar_lea.vmem [#allocation3], %s369
        %p371 = pneg %p69
        %p372 = pneg %p66
        %s373 = sand.u32 %s27, 1
        %s374 = scalar_lea.sflag [#allocation7], %s373
        %s375 = sand.u32 %s82, 1
        %s376 = smul.addr %s375, 8
        %s377 = scalar_lea.vmem [#allocation6], %s376
        %p378 = pneg %p95
        %p379 = pneg %p92
        %p380 = pneg %p121
        %p381 = pneg %p118
        %p382 = pneg %p147
        %p383 = pneg %p144
        %p384 = pneg %p173
        %p385 = pneg %p170
        %p386 = pneg %p194
        %p387 = pneg %p191
        %p388 = pneg %p222
        %p389 = pneg %p219
        %s390 = sand.u32 %s209, 1
        %s391 = scalar_lea.sflag [#allocation5], %s390
        %s392 = sand.u32 %s209, 1
        %s393 = smul.addr %s392, 8
        %s394 = scalar_lea.vmem [#allocation12], %s393
        %p395 = scmp.eq.s32.totalorder %s34, 0
        // Predicated region
        $region65: #{tpu_custom_call.1} parent=43 // pred_check
          %p396 = pneg %p395
        $region66: #{tpu_custom_call.1} parent=43 // pred_check_branch
          %398 = sbr.rel (%p396) target = $region68
        $region67: #{tpu_custom_call.1} parent=43 // pred_region
          %vm399 = vcmask 261120
          %400 = vst.msk [vmem:[#allocation2] sm:$0xff] %vm399, 0.0
        $region68: #{tpu_custom_call.1} parent=43 // pred_fallthru
          _
        %v401 = vld [vmem:[%s340] sm:$0xff]
        %v402 = vld [vmem:[%s349] sm:$0xff]
        %v403 = vld [vmem:[#allocation8] sm:$0xff]
        %v404 = vld [vmem:[#allocation8 + $0x8] sm:$0xff]
        %v405 = vld [vmem:[#allocation8 + $0x10] sm:$0xff]
        %v406 = vld [vmem:[#allocation8 + $0x18] sm:$0xff]
        %vm407 = vcmask 261120
        %v409 = vsel %vm407, %v401, 0
        %411 = vmatprep.subr.mxu0 0.0
        %412 = vmatpush1.msra.mxu0 %v403
        %413 = vmatprep.subr.mxu0 0.0
        %414 = vmatpush1.msra.mxu0 %v404
        %415 = vmatprep.subr.mxu0 0.0
        %416 = vmatpush1.msra.mxu0 %v405
        %417 = vmatprep.subr.mxu0 0.0
        %418 = vmatpush1.msra.mxu0 %v406
        %419 = vmatprep.subr.mxu0 0.0
        %420 = vmatpush1.msra.mxu0 0.0
        %421 = vmatprep.subr.mxu0 0.0
        %422 = vmatpush1.msra.mxu0 0.0
        %423 = vmatprep.subr.mxu0 0.0
        %424 = vmatpush1.msra.mxu0 0.0
        %425 = vmatprep.subr.mxu0 0.0
        %426 = vmatpush1.msra.mxu0 0.0
        %427 = vmatprep.subr.mxu0 0.0
        %428 = vmatpush1.msra.mxu0 0.0
        %429 = vmatprep.subr.mxu0 0.0
        %430 = vmatpush1.msra.mxu0 0.0
        %431 = vmatprep.subr.mxu0 0.0
        %432 = vmatpush1.msra.mxu0 0.0
        %433 = vmatprep.subr.mxu0 0.0
        %434 = vmatpush1.msra.mxu0 0.0
        %435 = vmatprep.subr.mxu0 0.0
        %436 = vmatpush1.msra.mxu0 0.0
        %437 = vmatprep.subr.mxu0 0.0
        %438 = vmatpush1.msra.mxu0 0.0
        %439 = vmatprep.subr.mxu0 0.0
        %440 = vmatpush1.msra.mxu0 0.0
        %441 = vmatprep.subr.mxu0 0.0
        %442 = vmatpush1.msra.mxu0 0.0
        %443 = vmatprep.subr.mxu0 0.0
        %444 = vmatpush1.msra.mxu0 0.0
        %445 = vmatprep.subr.mxu0 0.0
        %446 = vmatpush1.msra.mxu0 0.0
        %447 = vmatprep.subr.mxu0 0.0
        %448 = vmatpush1.msra.mxu0 0.0
        %449 = vmatprep.subr.mxu0 0.0
        %450 = vmatpush1.msra.mxu0 0.0
        %451 = vmatprep.subr.mxu0 0.0
        %452 = vmatpush1.msra.mxu0 0.0
        %453 = vmatprep.subr.mxu0 0.0
        %454 = vmatpush1.msra.mxu0 0.0
        %455 = vmatprep.subr.mxu0 0.0
        %456 = vmatpush1.msra.mxu0 0.0
        %457 = vmatprep.subr.mxu0 0.0
        %458 = vmatpush1.msra.mxu0 0.0
        %459 = vmatprep.subr.mxu0 0.0
        %460 = vmatpush1.msra.mxu0 0.0
        %461 = vmatprep.subr.mxu0 0.0
        %462 = vmatpush1.msra.mxu0 0.0
        %463 = vmatprep.subr.mxu0 0.0
        %464 = vmatpush1.msra.mxu0 0.0
        %465 = vmatprep.subr.mxu0 0.0
        %466 = vmatpush1.msra.mxu0 0.0
        %467 = vmatprep.subr.mxu0 0.0
        %468 = vmatpush1.msra.mxu0 0.0
        %469 = vmatprep.subr.mxu0 0.0
        %470 = vmatpush1.msra.mxu0 0.0
        %471 = vmatprep.subr.mxu0 0.0
        %472 = vmatpush1.msra.mxu0 0.0
        %473 = vmatprep.subr.mxu0 0.0
        %474 = vmatpush1.msra.mxu0 0.0
        %475 = vmatprep.mubr.f32.mxu0 0.0
        %476 = vmatmul.mubr.f32.gmra.mrb[0].mxu0 %v409
        %v477 = vpop.f32.mrb[0].mxu0
        %v478 = vadd.f32 0.0, %v477
        %v479 = vpop.f32.mrb[0].mxu0
        %480 = vdwg.mxu0
        %v481 = vld [vmem:[#allocation9] sm:$0xff]
        %v482 = vld [vmem:[#allocation9 + $0x8] sm:$0xff]
        %v483 = vld [vmem:[#allocation9 + $0x10] sm:$0xff]
        %v484 = vld [vmem:[#allocation9 + $0x18] sm:$0xff]
        %v486 = vsel %vm407, %v402, 0
        %488 = vmatprep.subr.mxu0 0.0
        %489 = vmatpush1.msra.mxu0 %v481
        %490 = vmatprep.subr.mxu0 0.0
        %491 = vmatpush1.msra.mxu0 %v482
        %492 = vmatprep.subr.mxu0 0.0
        %493 = vmatpush1.msra.mxu0 %v483
        %494 = vmatprep.subr.mxu0 0.0
        %495 = vmatpush1.msra.mxu0 %v484
        %496 = vmatprep.subr.mxu0 0.0
        %497 = vmatpush1.msra.mxu0 0.0
        %498 = vmatprep.subr.mxu0 0.0
        %499 = vmatpush1.msra.mxu0 0.0
        %500 = vmatprep.subr.mxu0 0.0
        %501 = vmatpush1.msra.mxu0 0.0
        %502 = vmatprep.subr.mxu0 0.0
        %503 = vmatpush1.msra.mxu0 0.0
        %504 = vmatprep.subr.mxu0 0.0
        %505 = vmatpush1.msra.mxu0 0.0
        %506 = vmatprep.subr.mxu0 0.0
        %507 = vmatpush1.msra.mxu0 0.0
        %508 = vmatprep.subr.mxu0 0.0
        %509 = vmatpush1.msra.mxu0 0.0
        %510 = vmatprep.subr.mxu0 0.0
        %511 = vmatpush1.msra.mxu0 0.0
        %512 = vmatprep.subr.mxu0 0.0
        %513 = vmatpush1.msra.mxu0 0.0
        %514 = vmatprep.subr.mxu0 0.0
        %515 = vmatpush1.msra.mxu0 0.0
        %516 = vmatprep.subr.mxu0 0.0
        %517 = vmatpush1.msra.mxu0 0.0
        %518 = vmatprep.subr.mxu0 0.0
        %519 = vmatpush1.msra.mxu0 0.0
        %520 = vmatprep.subr.mxu0 0.0
        %521 = vmatpush1.msra.mxu0 0.0
        %522 = vmatprep.subr.mxu0 0.0
        %523 = vmatpush1.msra.mxu0 0.0
        %524 = vmatprep.subr.mxu0 0.0
        %525 = vmatpush1.msra.mxu0 0.0
        %526 = vmatprep.subr.mxu0 0.0
        %527 = vmatpush1.msra.mxu0 0.0
        %528 = vmatprep.subr.mxu0 0.0
        %529 = vmatpush1.msra.mxu0 0.0
        %530 = vmatprep.subr.mxu0 0.0
        %531 = vmatpush1.msra.mxu0 0.0
        %532 = vmatprep.subr.mxu0 0.0
        %533 = vmatpush1.msra.mxu0 0.0
        %534 = vmatprep.subr.mxu0 0.0
        %535 = vmatpush1.msra.mxu0 0.0
        %536 = vmatprep.subr.mxu0 0.0
        %537 = vmatpush1.msra.mxu0 0.0
        %538 = vmatprep.subr.mxu0 0.0
        %539 = vmatpush1.msra.mxu0 0.0
        %540 = vmatprep.subr.mxu0 0.0
        %541 = vmatpush1.msra.mxu0 0.0
        %542 = vmatprep.subr.mxu0 0.0
        %543 = vmatpush1.msra.mxu0 0.0
        %544 = vmatprep.subr.mxu0 0.0
        %545 = vmatpush1.msra.mxu0 0.0
        %546 = vmatprep.subr.mxu0 0.0
        %547 = vmatpush1.msra.mxu0 0.0
        %548 = vmatprep.subr.mxu0 0.0
        %549 = vmatpush1.msra.mxu0 0.0
        %550 = vmatprep.subr.mxu0 0.0
        %551 = vmatpush1.msra.mxu0 0.0
        %552 = vmatprep.mubr.f32.mxu0 0.0
        %553 = vmatmul.mubr.f32.gmra.mrb[0].mxu0 %v486
        %v554 = vpop.f32.mrb[0].mxu0
        %v555 = vadd.f32 0.0, %v554
        %v556 = vpop.f32.mrb[0].mxu0
        %557 = vdwg.mxu0
        %s558 = smul.u32 %s33, 8
        %v559 = vlaneseq
        %v560 = vshrl.u32 %v559, 7
        %v561 = vstv %s558
        %v562 = vadd.s32 %v560, %v561
        %v563 = vlaneseq
        %v564 = vand.u32 %v563, 127
        %vm565 = vcmp.le.s32.totalorder %v564, %v562
        %vm566 = vcmask 64512
        %v568 = vsel %vm566, %v478, 0
        %v571 = vsel %vm566, %v555, 0
        %573 = vmatprep.subr.mxu0 0.0
        %574 = vmatpush1.xpose.msra.mxu0 %v571
        %575 = vmatprep.subr.mxu0 0.0
        %576 = vmatpush1.xpose.msra.mxu0 0.0
        %577 = vmatprep.subr.mxu0 0.0
        %578 = vmatpush1.xpose.msra.mxu0 0.0
        %579 = vmatprep.subr.mxu0 0.0
        %580 = vmatpush1.xpose.msra.mxu0 0.0
        %581 = vmatprep.subr.mxu0 0.0
        %582 = vmatpush1.xpose.msra.mxu0 0.0
        %583 = vmatprep.subr.mxu0 0.0
        %584 = vmatpush1.xpose.msra.mxu0 0.0
        %585 = vmatprep.subr.mxu0 0.0
        %586 = vmatpush1.xpose.msra.mxu0 0.0
        %587 = vmatprep.subr.mxu0 0.0
        %588 = vmatpush1.xpose.msra.mxu0 0.0
        %589 = vmatprep.subr.mxu0 0.0
        %590 = vmatpush1.xpose.msra.mxu0 0.0
        %591 = vmatprep.subr.mxu0 0.0
        %592 = vmatpush1.xpose.msra.mxu0 0.0
        %593 = vmatprep.subr.mxu0 0.0
        %594 = vmatpush1.xpose.msra.mxu0 0.0
        %595 = vmatprep.subr.mxu0 0.0
        %596 = vmatpush1.xpose.msra.mxu0 0.0
        %597 = vmatprep.subr.mxu0 0.0
        %598 = vmatpush1.xpose.msra.mxu0 0.0
        %599 = vmatprep.subr.mxu0 0.0
        %600 = vmatpush1.xpose.msra.mxu0 0.0
        %601 = vmatprep.subr.mxu0 0.0
        %602 = vmatpush1.xpose.msra.mxu0 0.0
        %603 = vmatprep.subr.mxu0 0.0
        %604 = vmatpush1.xpose.msra.mxu0 0.0
        %605 = vmatprep.subr.mxu0 0.0
        %606 = vmatpush1.xpose.msra.mxu0 0.0
        %607 = vmatprep.subr.mxu0 0.0
        %608 = vmatpush1.xpose.msra.mxu0 0.0
        %609 = vmatprep.subr.mxu0 0.0
        %610 = vmatpush1.xpose.msra.mxu0 0.0
        %611 = vmatprep.subr.mxu0 0.0
        %612 = vmatpush1.xpose.msra.mxu0 0.0
        %613 = vmatprep.subr.mxu0 0.0
        %614 = vmatpush1.xpose.msra.mxu0 0.0
        %615 = vmatprep.subr.mxu0 0.0
        %616 = vmatpush1.xpose.msra.mxu0 0.0
        %617 = vmatprep.subr.mxu0 0.0
        %618 = vmatpush1.xpose.msra.mxu0 0.0
        %619 = vmatprep.subr.mxu0 0.0
        %620 = vmatpush1.xpose.msra.mxu0 0.0
        %621 = vmatprep.subr.mxu0 0.0
        %622 = vmatpush1.xpose.msra.mxu0 0.0
        %623 = vmatprep.subr.mxu0 0.0
        %624 = vmatpush1.xpose.msra.mxu0 0.0
        %625 = vmatprep.subr.mxu0 0.0
        %626 = vmatpush1.xpose.msra.mxu0 0.0
        %627 = vmatprep.subr.mxu0 0.0
        %628 = vmatpush1.xpose.msra.mxu0 0.0
        %629 = vmatprep.subr.mxu0 0.0
        %630 = vmatpush1.xpose.msra.mxu0 0.0
        %631 = vmatprep.subr.mxu0 0.0
        %632 = vmatpush1.xpose.msra.mxu0 0.0
        %633 = vmatprep.subr.mxu0 0.0
        %634 = vmatpush1.xpose.msra.mxu0 0.0
        %635 = vmatprep.subr.mxu0 0.0
        %636 = vmatpush1.xpose.msra.mxu0 0.0
        %637 = vmatprep.mubr.f32.mxu0 0.0
        %638 = vmatmul.mubr.f32.gmra.mrb[0].mxu0 %v568
        %v639 = vpop.f32.mrb[0].mxu0
        %v640 = vadd.f32 0.0, %v639
        %v641 = vpop.f32.mrb[0].mxu0
        %642 = vdwg.mxu0
        %v643 = vsel %vm565, %v640, -1e+30
        %v644 = vsel %vm566, %v643, -inf
        %645 = vmax.xlane.f32.xlu0 %v644
        %v646 = vpop.xlane.xlu0 %645
        %v647 = vsub.f32 %v643, %v646
        %v648 = vmul.f32 %v647, 1.442695
        %v649 = vpow.pop %v648
        %v650 = vsel %vm566, %v649, 0.0
        %651 = vadd.xlane.f32.xlu0 %v650
        %v652 = vpop.xlane.xlu0 %651
        %653 = vrot.lane.b32.xlu0 %v555, 96
        %v654 = vpop.permute.xlu0 %653
        %v657 = vsel %vm566, %v649, 0
        %659 = vmatprep.subr.mxu0 0.0
        %660 = vmatpush1.msra.mxu0 %v654
        %661 = vmatprep.subr.mxu0 0.0
        %662 = vmatpush1.msra.mxu0 0.0
        %663 = vmatprep.subr.mxu0 0.0
        %664 = vmatpush1.msra.mxu0 0.0
        %665 = vmatprep.subr.mxu0 0.0
        %666 = vmatpush1.msra.mxu0 0.0
        %667 = vmatprep.subr.mxu0 0.0
        %668 = vmatpush1.msra.mxu0 0.0
        %669 = vmatprep.subr.mxu0 0.0
        %670 = vmatpush1.msra.mxu0 0.0
        %671 = vmatprep.subr.mxu0 0.0
        %672 = vmatpush1.msra.mxu0 0.0
        %673 = vmatprep.subr.mxu0 0.0
        %674 = vmatpush1.msra.mxu0 0.0
        %675 = vmatprep.subr.mxu0 0.0
        %676 = vmatpush1.msra.mxu0 0.0
        %677 = vmatprep.subr.mxu0 0.0
        %678 = vmatpush1.msra.mxu0 0.0
        %679 = vmatprep.subr.mxu0 0.0
        %680 = vmatpush1.msra.mxu0 0.0
        %681 = vmatprep.subr.mxu0 0.0
        %682 = vmatpush1.msra.mxu0 0.0
        %683 = vmatprep.subr.mxu0 0.0
        %684 = vmatpush1.msra.mxu0 0.0
        %685 = vmatprep.subr.mxu0 0.0
        %686 = vmatpush1.msra.mxu0 0.0
        %687 = vmatprep.subr.mxu0 0.0
        %688 = vmatpush1.msra.mxu0 0.0
        %689 = vmatprep.subr.mxu0 0.0
        %690 = vmatpush1.msra.mxu0 0.0
        %691 = vmatprep.subr.mxu0 0.0
        %692 = vmatpush1.msra.mxu0 0.0
        %693 = vmatprep.subr.mxu0 0.0
        %694 = vmatpush1.msra.mxu0 0.0
        %695 = vmatprep.subr.mxu0 0.0
        %696 = vmatpush1.msra.mxu0 0.0
        %697 = vmatprep.subr.mxu0 0.0
        %698 = vmatpush1.msra.mxu0 0.0
        %699 = vmatprep.subr.mxu0 0.0
        %700 = vmatpush1.msra.mxu0 0.0
        %701 = vmatprep.subr.mxu0 0.0
        %702 = vmatpush1.msra.mxu0 0.0
        %703 = vmatprep.subr.mxu0 0.0
        %704 = vmatpush1.msra.mxu0 0.0
        %705 = vmatprep.subr.mxu0 0.0
        %706 = vmatpush1.msra.mxu0 0.0
        %707 = vmatprep.subr.mxu0 0.0
        %708 = vmatpush1.msra.mxu0 0.0
        %709 = vmatprep.subr.mxu0 0.0
        %710 = vmatpush1.msra.mxu0 0.0
        %711 = vmatprep.subr.mxu0 0.0
        %712 = vmatpush1.msra.mxu0 0.0
        %713 = vmatprep.subr.mxu0 0.0
        %714 = vmatpush1.msra.mxu0 0.0
        %715 = vmatprep.subr.mxu0 0.0
        %716 = vmatpush1.msra.mxu0 0.0
        %717 = vmatprep.subr.mxu0 0.0
        %718 = vmatpush1.msra.mxu0 0.0
        %719 = vmatprep.subr.mxu0 0.0
        %720 = vmatpush1.msra.mxu0 0.0
        %721 = vmatprep.subr.mxu0 0.0
        %722 = vmatpush1.msra.mxu0 0.0
        %723 = vmatprep.mubr.f32.mxu0 0.0
        %724 = vmatmul.mubr.f32.gmra.mrb[0].mxu0 %v657
        %v725 = vpop.f32.mrb[0].mxu0
        %v726 = vadd.f32 0.0, %v725
        %v727 = vpop.f32.mrb[0].mxu0
        %728 = vdwg.mxu0
        %v729 = vrcp.pop %v652
        %v730 = vmul.f32 %v726, %v729
        %731 = vrot.lane.b32.xlu0 %v478, 120
        %v732 = vpop.permute.xlu0 %731
        %733 = vrot.lane.b32.xlu0 %v555, 120
        %v734 = vpop.permute.xlu0 %733
        %v735 = vsel %vm566, %v732, 0
        %v737 = vsel %vm566, %v734, 0
        %739 = vmatprep.subr.mxu0 0.0
        %740 = vmatpush1.xpose.msra.mxu0 %v737
        %741 = vmatprep.subr.mxu0 0.0
        %742 = vmatpush1.xpose.msra.mxu0 0.0
        %743 = vmatprep.subr.mxu0 0.0
        %744 = vmatpush1.xpose.msra.mxu0 0.0
        %745 = vmatprep.subr.mxu0 0.0
        %746 = vmatpush1.xpose.msra.mxu0 0.0
        %747 = vmatprep.subr.mxu0 0.0
        %748 = vmatpush1.xpose.msra.mxu0 0.0
        %749 = vmatprep.subr.mxu0 0.0
        %750 = vmatpush1.xpose.msra.mxu0 0.0
        %751 = vmatprep.subr.mxu0 0.0
        %752 = vmatpush1.xpose.msra.mxu0 0.0
        %753 = vmatprep.subr.mxu0 0.0
        %754 = vmatpush1.xpose.msra.mxu0 0.0
        %755 = vmatprep.subr.mxu0 0.0
        %756 = vmatpush1.xpose.msra.mxu0 0.0
        %757 = vmatprep.subr.mxu0 0.0
        %758 = vmatpush1.xpose.msra.mxu0 0.0
        %759 = vmatprep.subr.mxu0 0.0
        %760 = vmatpush1.xpose.msra.mxu0 0.0
        %761 = vmatprep.subr.mxu0 0.0
        %762 = vmatpush1.xpose.msra.mxu0 0.0
        %763 = vmatprep.subr.mxu0 0.0
        %764 = vmatpush1.xpose.msra.mxu0 0.0
        %765 = vmatprep.subr.mxu0 0.0
        %766 = vmatpush1.xpose.msra.mxu0 0.0
        %767 = vmatprep.subr.mxu0 0.0
        %768 = vmatpush1.xpose.msra.mxu0 0.0
        %769 = vmatprep.subr.mxu0 0.0
        %770 = vmatpush1.xpose.msra.mxu0 0.0
        %771 = vmatprep.subr.mxu0 0.0
        %772 = vmatpush1.xpose.msra.mxu0 0.0
        %773 = vmatprep.subr.mxu0 0.0
        %774 = vmatpush1.xpose.msra.mxu0 0.0
        %775 = vmatprep.subr.mxu0 0.0
        %776 = vmatpush1.xpose.msra.mxu0 0.0
        %777 = vmatprep.subr.mxu0 0.0
        %778 = vmatpush1.xpose.msra.mxu0 0.0
        %779 = vmatprep.subr.mxu0 0.0
        %780 = vmatpush1.xpose.msra.mxu0 0.0
        %781 = vmatprep.subr.mxu0 0.0
        %782 = vmatpush1.xpose.msra.mxu0 0.0
        %783 = vmatprep.subr.mxu0 0.0
        %784 = vmatpush1.xpose.msra.mxu0 0.0
        %785 = vmatprep.subr.mxu0 0.0
        %786 = vmatpush1.xpose.msra.mxu0 0.0
        %787 = vmatprep.subr.mxu0 0.0
        %788 = vmatpush1.xpose.msra.mxu0 0.0
        %789 = vmatprep.subr.mxu0 0.0
        %790 = vmatpush1.xpose.msra.mxu0 0.0
        %791 = vmatprep.subr.mxu0 0.0
        %792 = vmatpush1.xpose.msra.mxu0 0.0
        %793 = vmatprep.subr.mxu0 0.0
        %794 = vmatpush1.xpose.msra.mxu0 0.0
        %795 = vmatprep.subr.mxu0 0.0
        %796 = vmatpush1.xpose.msra.mxu0 0.0
        %797 = vmatprep.subr.mxu0 0.0
        %798 = vmatpush1.xpose.msra.mxu0 0.0
        %799 = vmatprep.subr.mxu0 0.0
        %800 = vmatpush1.xpose.msra.mxu0 0.0
        %801 = vmatprep.subr.mxu0 0.0
        %802 = vmatpush1.xpose.msra.mxu0 0.0
        %803 = vmatprep.mubr.f32.mxu0 0.0
        %804 = vmatmul.mubr.f32.gmra.mrb[0].mxu0 %v735
        %v805 = vpop.f32.mrb[0].mxu0
        %v806 = vadd.f32 0.0, %v805
        %v807 = vpop.f32.mrb[0].mxu0
        %808 = vdwg.mxu0
        %v809 = vsel %vm565, %v806, -1e+30
        %v810 = vsel %vm566, %v809, -inf
        %811 = vmax.xlane.f32.xlu0 %v810
        %v812 = vpop.xlane.xlu0 %811
        %v813 = vsub.f32 %v809, %v812
        %v814 = vmul.f32 %v813, 1.442695
        %v815 = vpow.pop %v814
        %v816 = vsel %vm566, %v815, 0.0
        %817 = vadd.xlane.f32.xlu0 %v816
        %v818 = vpop.xlane.xlu0 %817
        %819 = vrot.lane.b32.xlu0 %v555, 88
        %v820 = vpop.permute.xlu0 %819
        %v823 = vsel %vm566, %v815, 0
        %825 = vmatprep.subr.mxu0 0.0
        %826 = vmatpush1.msra.mxu0 %v820
        %827 = vmatprep.subr.mxu0 0.0
        %828 = vmatpush1.msra.mxu0 0.0
        %829 = vmatprep.subr.mxu0 0.0
        %830 = vmatpush1.msra.mxu0 0.0
        %831 = vmatprep.subr.mxu0 0.0
        %832 = vmatpush1.msra.mxu0 0.0
        %833 = vmatprep.subr.mxu0 0.0
        %834 = vmatpush1.msra.mxu0 0.0
        %835 = vmatprep.subr.mxu0 0.0
        %836 = vmatpush1.msra.mxu0 0.0
        %837 = vmatprep.subr.mxu0 0.0
        %838 = vmatpush1.msra.mxu0 0.0
        %839 = vmatprep.subr.mxu0 0.0
        %840 = vmatpush1.msra.mxu0 0.0
        %841 = vmatprep.subr.mxu0 0.0
        %842 = vmatpush1.msra.mxu0 0.0
        %843 = vmatprep.subr.mxu0 0.0
        %844 = vmatpush1.msra.mxu0 0.0
        %845 = vmatprep.subr.mxu0 0.0
        %846 = vmatpush1.msra.mxu0 0.0
        %847 = vmatprep.subr.mxu0 0.0
        %848 = vmatpush1.msra.mxu0 0.0
        %849 = vmatprep.subr.mxu0 0.0
        %850 = vmatpush1.msra.mxu0 0.0
        %851 = vmatprep.subr.mxu0 0.0
        %852 = vmatpush1.msra.mxu0 0.0
        %853 = vmatprep.subr.mxu0 0.0
        %854 = vmatpush1.msra.mxu0 0.0
        %855 = vmatprep.subr.mxu0 0.0
        %856 = vmatpush1.msra.mxu0 0.0
        %857 = vmatprep.subr.mxu0 0.0
        %858 = vmatpush1.msra.mxu0 0.0
        %859 = vmatprep.subr.mxu0 0.0
        %860 = vmatpush1.msra.mxu0 0.0
        %861 = vmatprep.subr.mxu0 0.0
        %862 = vmatpush1.msra.mxu0 0.0
        %863 = vmatprep.subr.mxu0 0.0
        %864 = vmatpush1.msra.mxu0 0.0
        %865 = vmatprep.subr.mxu0 0.0
        %866 = vmatpush1.msra.mxu0 0.0
        %867 = vmatprep.subr.mxu0 0.0
        %868 = vmatpush1.msra.mxu0 0.0
        %869 = vmatprep.subr.mxu0 0.0
        %870 = vmatpush1.msra.mxu0 0.0
        %871 = vmatprep.subr.mxu0 0.0
        %872 = vmatpush1.msra.mxu0 0.0
        %873 = vmatprep.subr.mxu0 0.0
        %874 = vmatpush1.msra.mxu0 0.0
        %875 = vmatprep.subr.mxu0 0.0
        %876 = vmatpush1.msra.mxu0 0.0
        %877 = vmatprep.subr.mxu0 0.0
        %878 = vmatpush1.msra.mxu0 0.0
        %879 = vmatprep.subr.mxu0 0.0
        %880 = vmatpush1.msra.mxu0 0.0
        %881 = vmatprep.subr.mxu0 0.0
        %882 = vmatpush1.msra.mxu0 0.0
        %883 = vmatprep.subr.mxu0 0.0
        %884 = vmatpush1.msra.mxu0 0.0
        %885 = vmatprep.subr.mxu0 0.0
        %886 = vmatpush1.msra.mxu0 0.0
        %887 = vmatprep.subr.mxu0 0.0
        %888 = vmatpush1.msra.mxu0 0.0
        %889 = vmatprep.mubr.f32.mxu0 0.0
        %890 = vmatmul.mubr.f32.gmra.mrb[0].mxu0 %v823
        %v891 = vpop.f32.mrb[0].mxu0
        %v892 = vadd.f32 0.0, %v891
        %v893 = vpop.f32.mrb[0].mxu0
        %894 = vdwg.mxu0
        %v895 = vrcp.pop %v818
        %v896 = vmul.f32 %v892, %v895
        %897 = vrot.lane.b32.xlu0 %v478, 112
        %v898 = vpop.permute.xlu0 %897
        %899 = vrot.lane.b32.xlu0 %v555, 112
        %v900 = vpop.permute.xlu0 %899
        %v901 = vsel %vm566, %v898, 0
        %v903 = vsel %vm566, %v900, 0
        %905 = vmatprep.subr.mxu0 0.0
        %906 = vmatpush1.xpose.msra.mxu0 %v903
        %907 = vmatprep.subr.mxu0 0.0
        %908 = vmatpush1.xpose.msra.mxu0 0.0
        %909 = vmatprep.subr.mxu0 0.0
        %910 = vmatpush1.xpose.msra.mxu0 0.0
        %911 = vmatprep.subr.mxu0 0.0
        %912 = vmatpush1.xpose.msra.mxu0 0.0
        %913 = vmatprep.subr.mxu0 0.0
        %914 = vmatpush1.xpose.msra.mxu0 0.0
        %915 = vmatprep.subr.mxu0 0.0
        %916 = vmatpush1.xpose.msra.mxu0 0.0
        %917 = vmatprep.subr.mxu0 0.0
        %918 = vmatpush1.xpose.msra.mxu0 0.0
        %919 = vmatprep.subr.mxu0 0.0
        %920 = vmatpush1.xpose.msra.mxu0 0.0
        %921 = vmatprep.subr.mxu0 0.0
        %922 = vmatpush1.xpose.msra.mxu0 0.0
        %923 = vmatprep.subr.mxu0 0.0
        %924 = vmatpush1.xpose.msra.mxu0 0.0
        %925 = vmatprep.subr.mxu0 0.0
        %926 = vmatpush1.xpose.msra.mxu0 0.0
        %927 = vmatprep.subr.mxu0 0.0
        %928 = vmatpush1.xpose.msra.mxu0 0.0
        %929 = vmatprep.subr.mxu0 0.0
        %930 = vmatpush1.xpose.msra.mxu0 0.0
        %931 = vmatprep.subr.mxu0 0.0
        %932 = vmatpush1.xpose.msra.mxu0 0.0
        %933 = vmatprep.subr.mxu0 0.0
        %934 = vmatpush1.xpose.msra.mxu0 0.0
        %935 = vmatprep.subr.mxu0 0.0
        %936 = vmatpush1.xpose.msra.mxu0 0.0
        %937 = vmatprep.subr.mxu0 0.0
        %938 = vmatpush1.xpose.msra.mxu0 0.0
        %939 = vmatprep.subr.mxu0 0.0
        %940 = vmatpush1.xpose.msra.mxu0 0.0
        %941 = vmatprep.subr.mxu0 0.0
        %942 = vmatpush1.xpose.msra.mxu0 0.0
        %943 = vmatprep.subr.mxu0 0.0
        %944 = vmatpush1.xpose.msra.mxu0 0.0
        %945 = vmatprep.subr.mxu0 0.0
        %946 = vmatpush1.xpose.msra.mxu0 0.0
        %947 = vmatprep.subr.mxu0 0.0
        %948 = vmatpush1.xpose.msra.mxu0 0.0
        %949 = vmatprep.subr.mxu0 0.0
        %950 = vmatpush1.xpose.msra.mxu0 0.0
        %951 = vmatprep.subr.mxu0 0.0
        %952 = vmatpush1.xpose.msra.mxu0 0.0
        %953 = vmatprep.subr.mxu0 0.0
        %954 = vmatpush1.xpose.msra.mxu0 0.0
        %955 = vmatprep.subr.mxu0 0.0
        %956 = vmatpush1.xpose.msra.mxu0 0.0
        %957 = vmatprep.subr.mxu0 0.0
        %958 = vmatpush1.xpose.msra.mxu0 0.0
        %959 = vmatprep.subr.mxu0 0.0
        %960 = vmatpush1.xpose.msra.mxu0 0.0
        %961 = vmatprep.subr.mxu0 0.0
        %962 = vmatpush1.xpose.msra.mxu0 0.0
        %963 = vmatprep.subr.mxu0 0.0
        %964 = vmatpush1.xpose.msra.mxu0 0.0
        %965 = vmatprep.subr.mxu0 0.0
        %966 = vmatpush1.xpose.msra.mxu0 0.0
        %967 = vmatprep.subr.mxu0 0.0
        %968 = vmatpush1.xpose.msra.mxu0 0.0
        %969 = vmatprep.mubr.f32.mxu0 0.0
        %970 = vmatmul.mubr.f32.gmra.mrb[0].mxu0 %v901
        %v971 = vpop.f32.mrb[0].mxu0
        %v972 = vadd.f32 0.0, %v971
        %v973 = vpop.f32.mrb[0].mxu0
        %974 = vdwg.mxu0
        %v975 = vsel %vm565, %v972, -1e+30
        %v976 = vsel %vm566, %v975, -inf
        %977 = vmax.xlane.f32.xlu0 %v976
        %v978 = vpop.xlane.xlu0 %977
        %v979 = vsub.f32 %v975, %v978
        %v980 = vmul.f32 %v979, 1.442695
        %v981 = vpow.pop %v980
        %v982 = vsel %vm566, %v981, 0.0
        %983 = vadd.xlane.f32.xlu0 %v982
        %v984 = vpop.xlane.xlu0 %983
        %985 = vrot.lane.b32.xlu0 %v555, 80
        %v986 = vpop.permute.xlu0 %985
        %v989 = vsel %vm566, %v981, 0
        %991 = vmatprep.subr.mxu0 0.0
        %992 = vmatpush1.msra.mxu0 %v986
        %993 = vmatprep.subr.mxu0 0.0
        %994 = vmatpush1.msra.mxu0 0.0
        %995 = vmatprep.subr.mxu0 0.0
        %996 = vmatpush1.msra.mxu0 0.0
        %997 = vmatprep.subr.mxu0 0.0
        %998 = vmatpush1.msra.mxu0 0.0
        %999 = vmatprep.subr.mxu0 0.0
        %1000 = vmatpush1.msra.mxu0 0.0
        %1001 = vmatprep.subr.mxu0 0.0
        %1002 = vmatpush1.msra.mxu0 0.0
        %1003 = vmatprep.subr.mxu0 0.0
        %1004 = vmatpush1.msra.mxu0 0.0
        %1005 = vmatprep.subr.mxu0 0.0
        %1006 = vmatpush1.msra.mxu0 0.0
        %1007 = vmatprep.subr.mxu0 0.0
        %1008 = vmatpush1.msra.mxu0 0.0
        %1009 = vmatprep.subr.mxu0 0.0
        %1010 = vmatpush1.msra.mxu0 0.0
        %1011 = vmatprep.subr.mxu0 0.0
        %1012 = vmatpush1.msra.mxu0 0.0
        %1013 = vmatprep.subr.mxu0 0.0
        %1014 = vmatpush1.msra.mxu0 0.0
        %1015 = vmatprep.subr.mxu0 0.0
        %1016 = vmatpush1.msra.mxu0 0.0
        %1017 = vmatprep.subr.mxu0 0.0
        %1018 = vmatpush1.msra.mxu0 0.0
        %1019 = vmatprep.subr.mxu0 0.0
        %1020 = vmatpush1.msra.mxu0 0.0
        %1021 = vmatprep.subr.mxu0 0.0
        %1022 = vmatpush1.msra.mxu0 0.0
        %1023 = vmatprep.subr.mxu0 0.0
        %1024 = vmatpush1.msra.mxu0 0.0
        %1025 = vmatprep.subr.mxu0 0.0
        %1026 = vmatpush1.msra.mxu0 0.0
        %1027 = vmatprep.subr.mxu0 0.0
        %1028 = vmatpush1.msra.mxu0 0.0
        %1029 = vmatprep.subr.mxu0 0.0
        %1030 = vmatpush1.msra.mxu0 0.0
        %1031 = vmatprep.subr.mxu0 0.0
        %1032 = vmatpush1.msra.mxu0 0.0
        %1033 = vmatprep.subr.mxu0 0.0
        %1034 = vmatpush1.msra.mxu0 0.0
        %1035 = vmatprep.subr.mxu0 0.0
        %1036 = vmatpush1.msra.mxu0 0.0
        %1037 = vmatprep.subr.mxu0 0.0
        %1038 = vmatpush1.msra.mxu0 0.0
        %1039 = vmatprep.subr.mxu0 0.0
        %1040 = vmatpush1.msra.mxu0 0.0
        %1041 = vmatprep.subr.mxu0 0.0
        %1042 = vmatpush1.msra.mxu0 0.0
        %1043 = vmatprep.subr.mxu0 0.0
        %1044 = vmatpush1.msra.mxu0 0.0
        %1045 = vmatprep.subr.mxu0 0.0
        %1046 = vmatpush1.msra.mxu0 0.0
        %1047 = vmatprep.subr.mxu0 0.0
        %1048 = vmatpush1.msra.mxu0 0.0
        %1049 = vmatprep.subr.mxu0 0.0
        %1050 = vmatpush1.msra.mxu0 0.0
        %1051 = vmatprep.subr.mxu0 0.0
        %1052 = vmatpush1.msra.mxu0 0.0
        %1053 = vmatprep.subr.mxu0 0.0
        %1054 = vmatpush1.msra.mxu0 0.0
        %1055 = vmatprep.mubr.f32.mxu0 0.0
        %1056 = vmatmul.mubr.f32.gmra.mrb[0].mxu0 %v989
        %v1057 = vpop.f32.mrb[0].mxu0
        %v1058 = vadd.f32 0.0, %v1057
        %v1059 = vpop.f32.mrb[0].mxu0
        %1060 = vdwg.mxu0
        %v1061 = vrcp.pop %v984
        %v1062 = vmul.f32 %v1058, %v1061
        %1063 = vrot.lane.b32.xlu0 %v478, 104
        %v1064 = vpop.permute.xlu0 %1063
        %1065 = vrot.lane.b32.xlu0 %v555, 104
        %v1066 = vpop.permute.xlu0 %1065
        %v1067 = vsel %vm566, %v1064, 0
        %v1069 = vsel %vm566, %v1066, 0
        %1071 = vmatprep.subr.mxu0 0.0
        %1072 = vmatpush1.xpose.msra.mxu0 %v1069
        %1073 = vmatprep.subr.mxu0 0.0
        %1074 = vmatpush1.xpose.msra.mxu0 0.0
        %1075 = vmatprep.subr.mxu0 0.0
        %1076 = vmatpush1.xpose.msra.mxu0 0.0
        %1077 = vmatprep.subr.mxu0 0.0
        %1078 = vmatpush1.xpose.msra.mxu0 0.0
        %1079 = vmatprep.subr.mxu0 0.0
        %1080 = vmatpush1.xpose.msra.mxu0 0.0
        %1081 = vmatprep.subr.mxu0 0.0
        %1082 = vmatpush1.xpose.msra.mxu0 0.0
        %1083 = vmatprep.subr.mxu0 0.0
        %1084 = vmatpush1.xpose.msra.mxu0 0.0
        %1085 = vmatprep.subr.mxu0 0.0
        %1086 = vmatpush1.xpose.msra.mxu0 0.0
        %1087 = vmatprep.subr.mxu0 0.0
        %1088 = vmatpush1.xpose.msra.mxu0 0.0
        %1089 = vmatprep.subr.mxu0 0.0
        %1090 = vmatpush1.xpose.msra.mxu0 0.0
        %1091 = vmatprep.subr.mxu0 0.0
        %1092 = vmatpush1.xpose.msra.mxu0 0.0
        %1093 = vmatprep.subr.mxu0 0.0
        %1094 = vmatpush1.xpose.msra.mxu0 0.0
        %1095 = vmatprep.subr.mxu0 0.0
        %1096 = vmatpush1.xpose.msra.mxu0 0.0
        %1097 = vmatprep.subr.mxu0 0.0
        %1098 = vmatpush1.xpose.msra.mxu0 0.0
        %1099 = vmatprep.subr.mxu0 0.0
        %1100 = vmatpush1.xpose.msra.mxu0 0.0
        %1101 = vmatprep.subr.mxu0 0.0
        %1102 = vmatpush1.xpose.msra.mxu0 0.0
        %1103 = vmatprep.subr.mxu0 0.0
        %1104 = vmatpush1.xpose.msra.mxu0 0.0
        %1105 = vmatprep.subr.mxu0 0.0
        %1106 = vmatpush1.xpose.msra.mxu0 0.0
        %1107 = vmatprep.subr.mxu0 0.0
        %1108 = vmatpush1.xpose.msra.mxu0 0.0
        %1109 = vmatprep.subr.mxu0 0.0
        %1110 = vmatpush1.xpose.msra.mxu0 0.0
        %1111 = vmatprep.subr.mxu0 0.0
        %1112 = vmatpush1.xpose.msra.mxu0 0.0
        %1113 = vmatprep.subr.mxu0 0.0
        %1114 = vmatpush1.xpose.msra.mxu0 0.0
        %1115 = vmatprep.subr.mxu0 0.0
        %1116 = vmatpush1.xpose.msra.mxu0 0.0
        %1117 = vmatprep.subr.mxu0 0.0
        %1118 = vmatpush1.xpose.msra.mxu0 0.0
        %1119 = vmatprep.subr.mxu0 0.0
        %1120 = vmatpush1.xpose.msra.mxu0 0.0
        %1121 = vmatprep.subr.mxu0 0.0
        %1122 = vmatpush1.xpose.msra.mxu0 0.0
        %1123 = vmatprep.subr.mxu0 0.0
        %1124 = vmatpush1.xpose.msra.mxu0 0.0
        %1125 = vmatprep.subr.mxu0 0.0
        %1126 = vmatpush1.xpose.msra.mxu0 0.0
        %1127 = vmatprep.subr.mxu0 0.0
        %1128 = vmatpush1.xpose.msra.mxu0 0.0
        %1129 = vmatprep.subr.mxu0 0.0
        %1130 = vmatpush1.xpose.msra.mxu0 0.0
        %1131 = vmatprep.subr.mxu0 0.0
        %1132 = vmatpush1.xpose.msra.mxu0 0.0
        %1133 = vmatprep.subr.mxu0 0.0
        %1134 = vmatpush1.xpose.msra.mxu0 0.0
        %1135 = vmatprep.mubr.f32.mxu0 0.0
        %1136 = vmatmul.mubr.f32.gmra.mrb[0].mxu0 %v1067
        %v1137 = vpop.f32.mrb[0].mxu0
        %v1138 = vadd.f32 0.0, %v1137
        %v1139 = vpop.f32.mrb[0].mxu0
        %1140 = vdwg.mxu0
        %v1141 = vsel %vm565, %v1138, -1e+30
        %v1142 = vsel %vm566, %v1141, -inf
        %1143 = vmax.xlane.f32.xlu0 %v1142
        %v1144 = vpop.xlane.xlu0 %1143
        %v1145 = vsub.f32 %v1141, %v1144
        %v1146 = vmul.f32 %v1145, 1.442695
        %v1147 = vpow.pop %v1146
        %v1148 = vsel %vm566, %v1147, 0.0
        %1149 = vadd.xlane.f32.xlu0 %v1148
        %v1150 = vpop.xlane.xlu0 %1149
        %1151 = vrot.lane.b32.xlu0 %v555, 72
        %v1152 = vpop.permute.xlu0 %1151
        %v1155 = vsel %vm566, %v1147, 0
        %1157 = vmatprep.subr.mxu0 0.0
        %1158 = vmatpush1.msra.mxu0 %v1152
        %1159 = vmatprep.subr.mxu0 0.0
        %1160 = vmatpush1.msra.mxu0 0.0
        %1161 = vmatprep.subr.mxu0 0.0
        %1162 = vmatpush1.msra.mxu0 0.0
        %1163 = vmatprep.subr.mxu0 0.0
        %1164 = vmatpush1.msra.mxu0 0.0
        %1165 = vmatprep.subr.mxu0 0.0
        %1166 = vmatpush1.msra.mxu0 0.0
        %1167 = vmatprep.subr.mxu0 0.0
        %1168 = vmatpush1.msra.mxu0 0.0
        %1169 = vmatprep.subr.mxu0 0.0
        %1170 = vmatpush1.msra.mxu0 0.0
        %1171 = vmatprep.subr.mxu0 0.0
        %1172 = vmatpush1.msra.mxu0 0.0
        %1173 = vmatprep.subr.mxu0 0.0
        %1174 = vmatpush1.msra.mxu0 0.0
        %1175 = vmatprep.subr.mxu0 0.0
        %1176 = vmatpush1.msra.mxu0 0.0
        %1177 = vmatprep.subr.mxu0 0.0
        %1178 = vmatpush1.msra.mxu0 0.0
        %1179 = vmatprep.subr.mxu0 0.0
        %1180 = vmatpush1.msra.mxu0 0.0
        %1181 = vmatprep.subr.mxu0 0.0
        %1182 = vmatpush1.msra.mxu0 0.0
        %1183 = vmatprep.subr.mxu0 0.0
        %1184 = vmatpush1.msra.mxu0 0.0
        %1185 = vmatprep.subr.mxu0 0.0
        %1186 = vmatpush1.msra.mxu0 0.0
        %1187 = vmatprep.subr.mxu0 0.0
        %1188 = vmatpush1.msra.mxu0 0.0
        %1189 = vmatprep.subr.mxu0 0.0
        %1190 = vmatpush1.msra.mxu0 0.0
        %1191 = vmatprep.subr.mxu0 0.0
        %1192 = vmatpush1.msra.mxu0 0.0
        %1193 = vmatprep.subr.mxu0 0.0
        %1194 = vmatpush1.msra.mxu0 0.0
        %1195 = vmatprep.subr.mxu0 0.0
        %1196 = vmatpush1.msra.mxu0 0.0
        %1197 = vmatprep.subr.mxu0 0.0
        %1198 = vmatpush1.msra.mxu0 0.0
        %1199 = vmatprep.subr.mxu0 0.0
        %1200 = vmatpush1.msra.mxu0 0.0
        %1201 = vmatprep.subr.mxu0 0.0
        %1202 = vmatpush1.msra.mxu0 0.0
        %1203 = vmatprep.subr.mxu0 0.0
        %1204 = vmatpush1.msra.mxu0 0.0
        %1205 = vmatprep.subr.mxu0 0.0
        %1206 = vmatpush1.msra.mxu0 0.0
        %1207 = vmatprep.subr.mxu0 0.0
        %1208 = vmatpush1.msra.mxu0 0.0
        %1209 = vmatprep.subr.mxu0 0.0
        %1210 = vmatpush1.msra.mxu0 0.0
        %1211 = vmatprep.subr.mxu0 0.0
        %1212 = vmatpush1.msra.mxu0 0.0
        %1213 = vmatprep.subr.mxu0 0.0
        %1214 = vmatpush1.msra.mxu0 0.0
        %1215 = vmatprep.subr.mxu0 0.0
        %1216 = vmatpush1.msra.mxu0 0.0
        %1217 = vmatprep.subr.mxu0 0.0
        %1218 = vmatpush1.msra.mxu0 0.0
        %1219 = vmatprep.subr.mxu0 0.0
        %1220 = vmatpush1.msra.mxu0 0.0
        %1221 = vmatprep.mubr.f32.mxu0 0.0
        %1222 = vmatmul.mubr.f32.gmra.mrb[0].mxu0 %v1155
        %v1223 = vpop.f32.mrb[0].mxu0
        %v1224 = vadd.f32 0.0, %v1223
        %v1225 = vpop.f32.mrb[0].mxu0
        %1226 = vdwg.mxu0
        %v1227 = vrcp.pop %v1150
        %v1228 = vmul.f32 %v1224, %v1227
        %1230 = vrot.lane.b32.xlu0 %v896, 8
        %v1231 = vpop.permute.xlu0 %1230
        %1234 = vrot.lane.b32.xlu0 %v1062, 16
        %v1235 = vpop.permute.xlu0 %1234
        %1238 = vrot.lane.b32.xlu0 %v1228, 24
        %v1239 = vpop.permute.xlu0 %1238
        %v1241 = vsel %vm566, %v730, %v1231
        %vm1242 = vcmask 130048
        %v1243 = vsel %vm1242, %v1241, %v1235
        %vm1244 = vcmask 195584
        %v1245 = vsel %vm1244, %v1243, %v1239
        %v1246 = vld [vmem:[#allocation2] sm:$0xff]
        %v1247 = vld [vmem:[#allocation11] sm:$0xff]
        %v1248 = vld [vmem:[#allocation11 + $0x8] sm:$0xff]
        %v1249 = vld [vmem:[#allocation11 + $0x10] sm:$0xff]
        %v1250 = vld [vmem:[#allocation11 + $0x18] sm:$0xff]
        %v1252 = vsel %vm407, %v1245, 0
        %1254 = vmatprep.subr.mxu0 0.0
        %1255 = vmatpush1.msra.mxu0 %v1247
        %1256 = vmatprep.subr.mxu0 0.0
        %1257 = vmatpush1.msra.mxu0 %v1248
        %1258 = vmatprep.subr.mxu0 0.0
        %1259 = vmatpush1.msra.mxu0 %v1249
        %1260 = vmatprep.subr.mxu0 0.0
        %1261 = vmatpush1.msra.mxu0 %v1250
        %1262 = vmatprep.subr.mxu0 0.0
        %1263 = vmatpush1.msra.mxu0 0.0
        %1264 = vmatprep.subr.mxu0 0.0
        %1265 = vmatpush1.msra.mxu0 0.0
        %1266 = vmatprep.subr.mxu0 0.0
        %1267 = vmatpush1.msra.mxu0 0.0
        %1268 = vmatprep.subr.mxu0 0.0
        %1269 = vmatpush1.msra.mxu0 0.0
        %1270 = vmatprep.subr.mxu0 0.0
        %1271 = vmatpush1.msra.mxu0 0.0
        %1272 = vmatprep.subr.mxu0 0.0
        %1273 = vmatpush1.msra.mxu0 0.0
        %1274 = vmatprep.subr.mxu0 0.0
        %1275 = vmatpush1.msra.mxu0 0.0
        %1276 = vmatprep.subr.mxu0 0.0
        %1277 = vmatpush1.msra.mxu0 0.0
        %1278 = vmatprep.subr.mxu0 0.0
        %1279 = vmatpush1.msra.mxu0 0.0
        %1280 = vmatprep.subr.mxu0 0.0
        %1281 = vmatpush1.msra.mxu0 0.0
        %1282 = vmatprep.subr.mxu0 0.0
        %1283 = vmatpush1.msra.mxu0 0.0
        %1284 = vmatprep.subr.mxu0 0.0
        %1285 = vmatpush1.msra.mxu0 0.0
        %1286 = vmatprep.subr.mxu0 0.0
        %1287 = vmatpush1.msra.mxu0 0.0
        %1288 = vmatprep.subr.mxu0 0.0
        %1289 = vmatpush1.msra.mxu0 0.0
        %1290 = vmatprep.subr.mxu0 0.0
        %1291 = vmatpush1.msra.mxu0 0.0
        %1292 = vmatprep.subr.mxu0 0.0
        %1293 = vmatpush1.msra.mxu0 0.0
        %1294 = vmatprep.subr.mxu0 0.0
        %1295 = vmatpush1.msra.mxu0 0.0
        %1296 = vmatprep.subr.mxu0 0.0
        %1297 = vmatpush1.msra.mxu0 0.0
        %1298 = vmatprep.subr.mxu0 0.0
        %1299 = vmatpush1.msra.mxu0 0.0
        %1300 = vmatprep.subr.mxu0 0.0
        %1301 = vmatpush1.msra.mxu0 0.0
        %1302 = vmatprep.subr.mxu0 0.0
        %1303 = vmatpush1.msra.mxu0 0.0
        %1304 = vmatprep.subr.mxu0 0.0
        %1305 = vmatpush1.msra.mxu0 0.0
        %1306 = vmatprep.subr.mxu0 0.0
        %1307 = vmatpush1.msra.mxu0 0.0
        %1308 = vmatprep.subr.mxu0 0.0
        %1309 = vmatpush1.msra.mxu0 0.0
        %1310 = vmatprep.subr.mxu0 0.0
        %1311 = vmatpush1.msra.mxu0 0.0
        %1312 = vmatprep.subr.mxu0 0.0
        %1313 = vmatpush1.msra.mxu0 0.0
        %1314 = vmatprep.subr.mxu0 0.0
        %1315 = vmatpush1.msra.mxu0 0.0
        %1316 = vmatprep.subr.mxu0 0.0
        %1317 = vmatpush1.msra.mxu0 0.0
        %1318 = vmatprep.mubr.f32.mxu0 0.0
        %1319 = vmatmul.mubr.f32.gmra.mrb[0].mxu0 %v1252
        %v1320 = vpop.f32.mrb[0].mxu0
        %v1321 = vadd.f32 0.0, %v1320
        %v1322 = vpop.f32.mrb[0].mxu0
        %1323 = vdwg.mxu0
        %v1324 = vadd.f32 %v1246, %v1321
        %1325 = vst.msk [vmem:[#allocation2] sm:$0xff] %vm407, %v1324
        // Predicated region
        $region69: #{tpu_custom_call.1} parent=43 // pred_check
          %p1326 = pneg %p395
        $region70: #{tpu_custom_call.1} parent=43 // pred_check_branch
          %1328 = sbr.rel (%p1326) target = $region72
        $region71: #{tpu_custom_call.1} parent=43 // pred_region
          %v1329 = vld [vmem:[#allocation2] sm:$0xff]
          %v1330 = vld [vmem:[%s5] sm:$0x1]
          %v1332 = vlaneseq
          %v1333 = vshrl.u32 %v1332, 7
          %v1334 = vsub.s32 0, %v1333
          %v1335 = vrot.slane %v1330, %v1334
          %v1337 = vadd.f32 %v1329, %v1335
          %1338 = vst.msk [vmem:[%s394] sm:$0xff] %vm407, %v1337
        $region72: #{tpu_custom_call.1} parent=43 // pred_fallthru
          _
        %s1339 = sand.u32 %s209, 1
        %s1340 = scalar_lea.sflag [#allocation5], %s1339
        %s1341 = sand.u32 %s209, 1
        %s1342 = smul.addr %s1341, 8
        %s1343 = scalar_lea.vmem [#allocation12], %s1342
        // Predicated region
        $region73: #{tpu_custom_call.1} parent=43 // pred_check
          %p1344 = pneg %p219
        $region74: #{tpu_custom_call.1} parent=43 // pred_check_branch
          %1346 = sbr.rel (%p1344) target = $region76
        $region75: #{tpu_custom_call.1} parent=43 // pred_region
          %s1348 = ssub.s32 128, 128
          %1349 = vsyncadd %s1340, %s1348
          %s1350 = sadd.s32 %s33, %s32
          %s1351 = smul.addr %s1350, 128
          %s1352 = scalar_lea.hbm %s6, %s1351
          %s1354 = sshll.u32 %s1343, 4
          %s1355 = int_to_ptr.vmem [resolvable:$true] %s1354
          %1357 = dma.vmem_to_hbm [thread:$0]  %s1355, 128, %s1352, %s1340
        $region76: #{tpu_custom_call.1} parent=43 // pred_fallthru
          _
      $region44: #{tpu_custom_call.1} parent=5 // pred_fallthru
        _
      %p1358 = scmp.le.s32.totalorder 2, %s22
      // Predicated region
      $region77: #{tpu_custom_call.1} parent=5 // pred_check
        %p1359 = pneg %p1358
      $region78: #{tpu_custom_call.1} parent=5 // pred_check_branch
        %1361 = sbr.rel (%p1359) target = $region80
      $region79: #{tpu_custom_call.1} parent=5 // pred_region
        %s1362 = ssub.s32 %s22, 2
        // Predicated region
        $region81: #{tpu_custom_call.1} parent=79 // pred_check
          %p1363 = pneg %p225
        $region82: #{tpu_custom_call.1} parent=79 // pred_check_branch
          %1365 = sbr.rel (%p1363) target = $region84
        $region83: #{tpu_custom_call.1} parent=79 // pred_region
          %s1366 = sand.u32 %s210, 1
          %s1367 = scalar_lea.sflag [#allocation5], %s1366
          %s1368 = sand.u32 %s210, 1
          %s1369 = smul.addr %s1368, 8
          %s1370 = scalar_lea.vmem [#allocation12], %s1369
          %1371 = dma.done %s1367, 128
        $region84: #{tpu_custom_call.1} parent=79 // pred_fallthru
          _
      $region80: #{tpu_custom_call.1} parent=5 // pred_fallthru
        _
    $region6: #{tpu_custom_call.1} parent=1 // loop_footer
      %s26 = sadd.s32 1, %s22
    $region7: #{tpu_custom_call.1} parent=1 // loop_footer_branch
      %21 = sbr.rel target = $region3
    $region8: #{tpu_custom_call.1} parent=1 // loop_exit
      _
    %1372 = vsyncpa [#allocation4], 1
    %s1373 = scalar_lea.sflag [#allocation4], 1
    %1374 = vsyncpa %s1373, 1
    %1375 = vsyncpa [#allocation7], 1
    %s1376 = scalar_lea.sflag [#allocation7], 1
    %1377 = vsyncpa %s1376, 1
    %1378 = vsyncpa [#allocation10], 1
    %1379 = vsyncpa [#allocation5], 1
    %s1380 = scalar_lea.sflag [#allocation5], 1
    %1381 = vsyncpa %s1380, 1

</llo_original>
